<compile_context>
chip_gen: v7x
topology: tpu7x:2x2x1
jax: 0.10.0
libtpu: 0.0.40
codegen_flags: <defaults>
</compile_context>

<pallas_src>
import jax
import jax.numpy as jnp
from jax.experimental import pallas as pl
from jax.experimental.pallas import tpu as pltpu


# ----------------------------------------------------------------------------
# In-kernel helpers (operate on (C, M) values; M = bt*H*W is the lane axis).
# ----------------------------------------------------------------------------
def _shift(v, off):
  """out[:, m] = v[:, m + off] (circular; wrapped entries are masked by caller)."""
  if off == 0:
    return v
  # jnp.roll lowers to two static lane slices + a 2-way concat; semantics are
  # unambiguous.  (pltpu.roll could be swapped in as an XLU rotate.)
  return jnp.roll(v, -off, axis=1)


def _border_masks(yy, xx, Hc, Wc):
  """Validity masks (1, M) for row/col shifts dy, dx in {-1, 0, 1}."""
  vy = {dy: jnp.logical_and(yy + dy >= 0, yy + dy <= Hc - 1) for dy in (-1, 0, 1)}
  vx = {dx: jnp.logical_and(xx + dx >= 0, xx + dx <= Wc - 1) for dx in (-1, 0, 1)}
  return vy, vx


def _conv3x3(x, w_t, b, vy, vx, Wc, cdt):
  """x: (C, M) f32, w_t: (Cout, 9*C), b: (Cout, 1) -> (Cout, M) f32.

  One transposed GEMM per conv: the 9 shifted taps are stacked along the
  sublane/K axis; M stays on the lane axis (MXU columns fully used).
  """
  taps = []
  for dy in (-1, 0, 1):
    for dx in (-1, 0, 1):
      t = _shift(x, dy * Wc + dx)
      if dy == 0 and dx == 0:
        taps.append(t)
      else:
        taps.append(jnp.where(jnp.logical_and(vy[dy], vx[dx]), t, 0.0))
  rhs = jnp.concatenate(taps, axis=0).astype(cdt)            # (9*C, M), K on sublanes
  acc = jnp.dot(w_t, rhs, preferred_element_type=jnp.float32)  # (Cout, M) f32
  return acc + b


def _maxpool3x3_s2(y, vy, vx, Wc, sel):
  """y: (Cout, M) f32, sel: (M, M2) 0/1 f32.  3x3 / stride-2 / pad-1 max pool."""
  neg = jnp.float32(-jnp.inf)
  r = y
  for dy in (-1, 1):                                         # separable: rows ...
    r = jnp.maximum(r, jnp.where(vy[dy], _shift(y, dy * Wc), neg))
  p = r
  for dx in (-1, 1):                                         # ... then cols
    p = jnp.maximum(p, jnp.where(vx[dx], _shift(r, dx), neg))
  # Exact stride-2 gather as a 0/1 selection matmul (kept in f32 for exactness).
  return jnp.dot(p, sel, preferred_element_type=jnp.float32)   # (Cout, M2)


def _make_kernel(bt, H, W, Cin, Cout, cdt):
  Ho, Wo = H // 2, W // 2
  M2 = bt * Ho * Wo

  def kernel(x_ref, yx1_ref, yx2_ref, w1_ref, b1_ref, rw_ref, rb_ref, sel_ref,
             o_ref):
    vy1, vx1 = _border_masks(yx1_ref[0:1, :], yx1_ref[1:2, :], H, W)
    vy2, vx2 = _border_masks(yx2_ref[0:1, :], yx2_ref[1:2, :], Ho, Wo)

    # ---- conv1 (Cin -> Cout) on the full-resolution grid --------------------
    y = _conv3x3(x_ref[...], w1_ref[...], b1_ref[...], vy1, vx1, W, cdt)

    # ---- maxpool 3x3, stride 2, pad 1  -> (Cout, M2) ------------------------
    x_cur = _maxpool3x3_s2(y, vy1, vx1, W, sel_ref[...])

    # ---- two residual blocks (tiny, fully vreg/VMEM-resident) ---------------
    for i in range(2):
      h = _conv3x3(jnp.maximum(x_cur, 0.0), rw_ref[2 * i], rb_ref[2 * i],
                   vy2, vx2, Wo, cdt)
      h = _conv3x3(jnp.maximum(h, 0.0), rw_ref[2 * i + 1], rb_ref[2 * i + 1],
                   vy2, vx2, Wo, cdt)
      x_cur = x_cur + h                                       # skip connection

    # Single lane-dense HBM store per grid step.
    o_ref[...] = x_cur.reshape(1, Cout, M2).astype(o_ref.dtype)

  return kernel


# ----------------------------------------------------------------------------
# Wrapper-side constant helpers (traced once under jit; constant-folded).
# ----------------------------------------------------------------------------
def _flat_coords(bt, Hc, Wc):
  m = jnp.arange(bt * Hc * Wc, dtype=jnp.int32)
  return jnp.stack([(m // Wc) % Hc, m % Wc], axis=0)          # (2, bt*Hc*Wc) int32


def _pool_selection(bt, H, W):
  """0/1 matrix S (bt*H*W, bt*Ho*Wo): S[m, m2] = 1 iff m is the stride-2 center of m2."""
  Ho, Wo = H // 2, W // 2
  m2 = jnp.arange(bt * Ho * Wo)
  b = m2 // (Ho * Wo)
  rem = m2 % (Ho * Wo)
  src = b * (H * W) + 2 * (rem // Wo) * W + 2 * (rem % Wo)
  m = jnp.arange(bt * H * W)
  return (m[:, None] == src[None, :]).astype(jnp.float32)
  # TODO(synk): for very large spatial sizes replace this O(M*M2) selection
  # matrix with a strided downsample; for minigrid/procgen sizes it is tiny.


# ----------------------------------------------------------------------------
# ConvSequence forward (NCHW in / NCHW out, matching the PyTorch module).
# ----------------------------------------------------------------------------
def conv_sequence_forward(x_nchw, params, *, batch_tile=None,
                          compute_dtype=jnp.float32):
  N, Cin, H, W = x_nchw.shape
  Cout = params["conv_w"].shape[-1]
  assert H % 2 == 0 and W % 2 == 0, "kernel assumes even spatial dims"
  # TODO(synk): odd H/W needs the extra (H+1)//2 pooling row/col; not needed here.
  Ho, Wo = H // 2, W // 2

  # Batch tiling: >= 2 grid steps whenever N >= 2 (both v7x TensorCores busy);
  # otherwise the largest tile dividing N.
  if batch_tile is None:
    batch_tile = max(1, min(N // 2 if N >= 2 else 1, 8))
  batch_tile = max(1, min(batch_tile, N))
  while N % batch_tile:
    batch_tile -= 1
  num_tiles = N // batch_tile
  M, M2 = batch_tile * H * W, batch_tile * Ho * Wo

  # Channel-major input with (batch, y, x) flattened onto the lane axis:
  # the DMA'd block is (Cin, bt*H*W) -> dense lanes instead of Cin=4 lanes.
  x_cm = jnp.transpose(x_nchw, (1, 0, 2, 3)).reshape(Cin, N * H * W)
  x_cm = x_cm.astype(jnp.float32)

  # Transposed-GEMM weights: (3,3,Ci,Co) -> (Co, 9*Ci), K ordered (ky,kx,ci)
  # to match the in-kernel tap stacking.  Only GEMM operands take compute_dtype.
  w1_t = params["conv_w"].reshape(9 * Cin, Cout).T.astype(compute_dtype)
  b1 = params["conv_b"].reshape(Cout, 1).astype(jnp.float32)
  rw_t = jnp.stack(
      [params[r][k].reshape(9 * Cout, Cout).T
       for r in ("res0", "res1") for k in ("w0", "w1")], axis=0
  ).astype(compute_dtype)                                     # (4, Cout, 9*Cout)
  rb = jnp.stack(
      [params[r][k].reshape(Cout, 1)
       for r in ("res0", "res1") for k in ("b0", "b1")], axis=0
  ).astype(jnp.float32)                                       # (4, Cout, 1)

  yx1 = _flat_coords(batch_tile, H, W)                        # (2, M)  int32
  yx2 = _flat_coords(batch_tile, Ho, Wo)                      # (2, M2) int32
  sel = _pool_selection(batch_tile, H, W)                     # (M, M2) f32

  kernel = _make_kernel(batch_tile, H, W, Cin, Cout, compute_dtype)

  out = pl.pallas_call(
      kernel,
      out_shape=jax.ShapeDtypeStruct((num_tiles, Cout, M2), jnp.float32),
      grid=(num_tiles,),
      in_specs=[
          pl.BlockSpec((Cin, M), lambda n: (0, n)),             # activations
          pl.BlockSpec((2, M), lambda n: (0, 0)),               # (y,x) coords, conv grid
          pl.BlockSpec((2, M2), lambda n: (0, 0)),              # (y,x) coords, res grid
          pl.BlockSpec((Cout, 9 * Cin), lambda n: (0, 0)),      # conv1 weights
          pl.BlockSpec((Cout, 1), lambda n: (0, 0)),            # conv1 bias
          pl.BlockSpec((4, Cout, 9 * Cout), lambda n: (0, 0, 0)),  # res weights
          pl.BlockSpec((4, Cout, 1), lambda n: (0, 0, 0)),      # res biases
          pl.BlockSpec((M, M2), lambda n: (0, 0)),              # pool selection
      ],
      out_specs=pl.BlockSpec((1, Cout, M2), lambda n: (n, 0, 0)),
      compiler_params=pltpu.CompilerParams(
          dimension_semantics=("parallel",)),
  )(x_cm, yx1, yx2, w1_t, b1, rw_t, rb, sel)

  out = out.reshape(num_tiles, Cout, batch_tile, Ho, Wo)
  out = jnp.transpose(out, (0, 2, 1, 3, 4)).reshape(N, Cout, Ho, Wo)
  return out


# ----------------------------------------------------------------------------
# Deterministic parameter init (PyTorch Conv2d default: U(-1/sqrt(fan_in), ..)).
# ----------------------------------------------------------------------------
def init_conv(key, cin, cout):
  kw, kb = jax.random.split(key)
  bound = 1.0 / jnp.sqrt(cin * 9.0)
  w = jax.random.uniform(kw, (3, 3, cin, cout), jnp.float32, -bound, bound)
  b = jax.random.uniform(kb, (cout,), jnp.float32, -bound, bound)
  return w, b


def init_params(key, in_channels, out_channels):
  ks = jax.random.split(key, 5)
  cw, cb = init_conv(ks[0], in_channels, out_channels)
  r0w0, r0b0 = init_conv(ks[1], out_channels, out_channels)
  r0w1, r0b1 = init_conv(ks[2], out_channels, out_channels)
  r1w0, r1b0 = init_conv(ks[3], out_channels, out_channels)
  r1w1, r1b1 = init_conv(ks[4], out_channels, out_channels)
  return {
      "conv_w": cw, "conv_b": cb,
      "res0": {"w0": r0w0, "b0": r0b0, "w1": r0w1, "b1": r0b1},
      "res1": {"w0": r1w0, "b0": r1b0, "w1": r1w1, "b1": r1b1},
  }


# ----------------------------------------------------------------------------
# Pure-JAX reference (lax conv / reduce_window) for a silent correctness check.
# ----------------------------------------------------------------------------
def _ref_conv(x, w, b):
  y = jax.lax.conv_general_dilated(
      x, w, window_strides=(1, 1), padding="SAME",
      dimension_numbers=("NHWC", "HWIO", "NHWC"))
  return y + b.reshape(1, 1, 1, -1)


def _ref_forward(x_nchw, p):
  x = jnp.transpose(x_nchw, (0, 2, 3, 1))
  x = _ref_conv(x, p["conv_w"], p["conv_b"])
  x = jax.lax.reduce_window(
      x, -jnp.inf, jax.lax.max,
      window_dimensions=(1, 3, 3, 1), window_strides=(1, 2, 2, 1),
      padding=((0, 0), (1, 1), (1, 1), (0, 0)))
  for rp in (p["res0"], p["res1"]):
    h = _ref_conv(jnp.maximum(x, 0.0), rp["w0"], rp["b0"])
    x = _ref_conv(jnp.maximum(h, 0.0), rp["w1"], rp["b1"]) + x
  return jnp.transpose(x, (0, 3, 1, 2))


if __name__ == "__main__":
  key = jax.random.PRNGKey(0)
  k_x, k_p = jax.random.split(key)

  N, C_in, H, W = 2, 4, 16, 16
  C_out = 8

  x = jax.random.normal(k_x, (N, C_in, H, W), jnp.float32)   # NCHW, like PyTorch
  params = init_params(k_p, C_in, C_out)

  out = jax.jit(conv_sequence_forward)(x, params)
  out = jax.block_until_ready(out)

  expected_shape = (N, C_out, (H + 1) // 2, (W + 1) // 2)
  assert out.shape == expected_shape, (out.shape, expected_shape)

  ref = _ref_forward(x, params)
  max_err = float(jnp.max(jnp.abs(out - ref)))
  assert jnp.allclose(out, ref, atol=1e-4, rtol=1e-4), max_err

  print("KERNEL_OK")
</pallas_src>

<mosaic_0001>
module attributes {stable_mosaic.version = 11 : i64} {
  func.func @kernel(%arg0: i32, %arg1: memref<4x256xf32, #tpu.memory_space<vmem>>, %arg2: memref<2x256xi32, #tpu.memory_space<vmem>>, %arg3: memref<2x64xi32, #tpu.memory_space<vmem>>, %arg4: memref<8x36xf32, #tpu.memory_space<vmem>>, %arg5: memref<8x1xf32, #tpu.memory_space<vmem>>, %arg6: memref<4x8x72xf32, #tpu.memory_space<vmem>>, %arg7: memref<4x8x1xf32, #tpu.memory_space<vmem>>, %arg8: memref<256x64xf32, #tpu.memory_space<vmem>>, %arg9: memref<1x8x64xf32, #tpu.memory_space<vmem>>) attributes {dimension_semantics = [#tpu.dimension_semantics<parallel>], iteration_bounds = array<i64: 2>, scalar_prefetch = 0 : i64, scratch_operands = 0 : i64, tpu.core_type = #tpu.core_type<tc>, window_params = [{transform_indices = @transform_0, window_bounds = array<i64: 4, 256>}, {pipeline_mode = #tpu.pipeline_mode<synchronous>, transform_indices = @transform_1, window_bounds = array<i64: 2, 256>}, {pipeline_mode = #tpu.pipeline_mode<synchronous>, transform_indices = @transform_2, window_bounds = array<i64: 2, 64>}, {pipeline_mode = #tpu.pipeline_mode<synchronous>, transform_indices = @transform_3, window_bounds = array<i64: 8, 36>}, {pipeline_mode = #tpu.pipeline_mode<synchronous>, transform_indices = @transform_4, window_bounds = array<i64: 8, 1>}, {pipeline_mode = #tpu.pipeline_mode<synchronous>, transform_indices = @transform_5, window_bounds = array<i64: 4, 8, 72>}, {pipeline_mode = #tpu.pipeline_mode<synchronous>, transform_indices = @transform_6, window_bounds = array<i64: 4, 8, 1>}, {pipeline_mode = #tpu.pipeline_mode<synchronous>, transform_indices = @transform_7, window_bounds = array<i64: 256, 64>}, {transform_indices = @transform_8, window_bounds = array<i64: 1, 8, 64>}]} {
    %c0 = arith.constant 0 : index
    %c0_0 = arith.constant 0 : index
    %0 = vector.load %arg2[%c0, %c0_0] : memref<2x256xi32, #tpu.memory_space<vmem>>, vector<1x256xi32>
    %c1 = arith.constant 1 : index
    %c0_1 = arith.constant 0 : index
    %1 = vector.load %arg2[%c1, %c0_1] : memref<2x256xi32, #tpu.memory_space<vmem>>, vector<1x256xi32>
    %c-1_i32 = arith.constant -1 : i32
    %2 = vector.broadcast %c-1_i32 : i32 to vector<1x256xi32>
    %3 = arith.addi %0, %2 : vector<1x256xi32>
    %c0_i32 = arith.constant 0 : i32
    %4 = vector.broadcast %c0_i32 : i32 to vector<1x256xi32>
    %5 = arith.cmpi sge, %3, %4 : vector<1x256xi32>
    %c-1_i32_2 = arith.constant -1 : i32
    %6 = vector.broadcast %c-1_i32_2 : i32 to vector<1x256xi32>
    %7 = arith.addi %0, %6 : vector<1x256xi32>
    %c15_i32 = arith.constant 15 : i32
    %8 = vector.broadcast %c15_i32 : i32 to vector<1x256xi32>
    %9 = arith.cmpi sle, %7, %8 : vector<1x256xi32>
    %10 = arith.andi %5, %9 : vector<1x256xi1>
    %c0_i32_3 = arith.constant 0 : i32
    %11 = vector.broadcast %c0_i32_3 : i32 to vector<1x256xi32>
    %12 = arith.addi %0, %11 : vector<1x256xi32>
    %c0_i32_4 = arith.constant 0 : i32
    %13 = vector.broadcast %c0_i32_4 : i32 to vector<1x256xi32>
    %14 = arith.cmpi sge, %12, %13 : vector<1x256xi32>
    %c0_i32_5 = arith.constant 0 : i32
    %15 = vector.broadcast %c0_i32_5 : i32 to vector<1x256xi32>
    %16 = arith.addi %0, %15 : vector<1x256xi32>
    %c15_i32_6 = arith.constant 15 : i32
    %17 = vector.broadcast %c15_i32_6 : i32 to vector<1x256xi32>
    %18 = arith.cmpi sle, %16, %17 : vector<1x256xi32>
    %19 = arith.andi %14, %18 : vector<1x256xi1>
    %c1_i32 = arith.constant 1 : i32
    %20 = vector.broadcast %c1_i32 : i32 to vector<1x256xi32>
    %21 = arith.addi %0, %20 : vector<1x256xi32>
    %c0_i32_7 = arith.constant 0 : i32
    %22 = vector.broadcast %c0_i32_7 : i32 to vector<1x256xi32>
    %23 = arith.cmpi sge, %21, %22 : vector<1x256xi32>
    %c1_i32_8 = arith.constant 1 : i32
    %24 = vector.broadcast %c1_i32_8 : i32 to vector<1x256xi32>
    %25 = arith.addi %0, %24 : vector<1x256xi32>
    %c15_i32_9 = arith.constant 15 : i32
    %26 = vector.broadcast %c15_i32_9 : i32 to vector<1x256xi32>
    %27 = arith.cmpi sle, %25, %26 : vector<1x256xi32>
    %28 = arith.andi %23, %27 : vector<1x256xi1>
    %c-1_i32_10 = arith.constant -1 : i32
    %29 = vector.broadcast %c-1_i32_10 : i32 to vector<1x256xi32>
    %30 = arith.addi %1, %29 : vector<1x256xi32>
    %c0_i32_11 = arith.constant 0 : i32
    %31 = vector.broadcast %c0_i32_11 : i32 to vector<1x256xi32>
    %32 = arith.cmpi sge, %30, %31 : vector<1x256xi32>
    %c-1_i32_12 = arith.constant -1 : i32
    %33 = vector.broadcast %c-1_i32_12 : i32 to vector<1x256xi32>
    %34 = arith.addi %1, %33 : vector<1x256xi32>
    %c15_i32_13 = arith.constant 15 : i32
    %35 = vector.broadcast %c15_i32_13 : i32 to vector<1x256xi32>
    %36 = arith.cmpi sle, %34, %35 : vector<1x256xi32>
    %37 = arith.andi %32, %36 : vector<1x256xi1>
    %c0_i32_14 = arith.constant 0 : i32
    %38 = vector.broadcast %c0_i32_14 : i32 to vector<1x256xi32>
    %39 = arith.addi %1, %38 : vector<1x256xi32>
    %c0_i32_15 = arith.constant 0 : i32
    %40 = vector.broadcast %c0_i32_15 : i32 to vector<1x256xi32>
    %41 = arith.cmpi sge, %39, %40 : vector<1x256xi32>
    %c0_i32_16 = arith.constant 0 : i32
    %42 = vector.broadcast %c0_i32_16 : i32 to vector<1x256xi32>
    %43 = arith.addi %1, %42 : vector<1x256xi32>
    %c15_i32_17 = arith.constant 15 : i32
    %44 = vector.broadcast %c15_i32_17 : i32 to vector<1x256xi32>
    %45 = arith.cmpi sle, %43, %44 : vector<1x256xi32>
    %46 = arith.andi %41, %45 : vector<1x256xi1>
    %c1_i32_18 = arith.constant 1 : i32
    %47 = vector.broadcast %c1_i32_18 : i32 to vector<1x256xi32>
    %48 = arith.addi %1, %47 : vector<1x256xi32>
    %c0_i32_19 = arith.constant 0 : i32
    %49 = vector.broadcast %c0_i32_19 : i32 to vector<1x256xi32>
    %50 = arith.cmpi sge, %48, %49 : vector<1x256xi32>
    %c1_i32_20 = arith.constant 1 : i32
    %51 = vector.broadcast %c1_i32_20 : i32 to vector<1x256xi32>
    %52 = arith.addi %1, %51 : vector<1x256xi32>
    %c15_i32_21 = arith.constant 15 : i32
    %53 = vector.broadcast %c15_i32_21 : i32 to vector<1x256xi32>
    %54 = arith.cmpi sle, %52, %53 : vector<1x256xi32>
    %55 = arith.andi %50, %54 : vector<1x256xi1>
    %c0_22 = arith.constant 0 : index
    %c0_23 = arith.constant 0 : index
    %56 = vector.load %arg3[%c0_22, %c0_23] : memref<2x64xi32, #tpu.memory_space<vmem>>, vector<1x64xi32>
    %c1_24 = arith.constant 1 : index
    %c0_25 = arith.constant 0 : index
    %57 = vector.load %arg3[%c1_24, %c0_25] : memref<2x64xi32, #tpu.memory_space<vmem>>, vector<1x64xi32>
    %c-1_i32_26 = arith.constant -1 : i32
    %58 = vector.broadcast %c-1_i32_26 : i32 to vector<1x64xi32>
    %59 = arith.addi %56, %58 : vector<1x64xi32>
    %c0_i32_27 = arith.constant 0 : i32
    %60 = vector.broadcast %c0_i32_27 : i32 to vector<1x64xi32>
    %61 = arith.cmpi sge, %59, %60 : vector<1x64xi32>
    %c-1_i32_28 = arith.constant -1 : i32
    %62 = vector.broadcast %c-1_i32_28 : i32 to vector<1x64xi32>
    %63 = arith.addi %56, %62 : vector<1x64xi32>
    %c7_i32 = arith.constant 7 : i32
    %64 = vector.broadcast %c7_i32 : i32 to vector<1x64xi32>
    %65 = arith.cmpi sle, %63, %64 : vector<1x64xi32>
    %66 = arith.andi %61, %65 : vector<1x64xi1>
    %c0_i32_29 = arith.constant 0 : i32
    %67 = vector.broadcast %c0_i32_29 : i32 to vector<1x64xi32>
    %68 = arith.addi %56, %67 : vector<1x64xi32>
    %c0_i32_30 = arith.constant 0 : i32
    %69 = vector.broadcast %c0_i32_30 : i32 to vector<1x64xi32>
    %70 = arith.cmpi sge, %68, %69 : vector<1x64xi32>
    %c0_i32_31 = arith.constant 0 : i32
    %71 = vector.broadcast %c0_i32_31 : i32 to vector<1x64xi32>
    %72 = arith.addi %56, %71 : vector<1x64xi32>
    %c7_i32_32 = arith.constant 7 : i32
    %73 = vector.broadcast %c7_i32_32 : i32 to vector<1x64xi32>
    %74 = arith.cmpi sle, %72, %73 : vector<1x64xi32>
    %75 = arith.andi %70, %74 : vector<1x64xi1>
    %c1_i32_33 = arith.constant 1 : i32
    %76 = vector.broadcast %c1_i32_33 : i32 to vector<1x64xi32>
    %77 = arith.addi %56, %76 : vector<1x64xi32>
    %c0_i32_34 = arith.constant 0 : i32
    %78 = vector.broadcast %c0_i32_34 : i32 to vector<1x64xi32>
    %79 = arith.cmpi sge, %77, %78 : vector<1x64xi32>
    %c1_i32_35 = arith.constant 1 : i32
    %80 = vector.broadcast %c1_i32_35 : i32 to vector<1x64xi32>
    %81 = arith.addi %56, %80 : vector<1x64xi32>
    %c7_i32_36 = arith.constant 7 : i32
    %82 = vector.broadcast %c7_i32_36 : i32 to vector<1x64xi32>
    %83 = arith.cmpi sle, %81, %82 : vector<1x64xi32>
    %84 = arith.andi %79, %83 : vector<1x64xi1>
    %c-1_i32_37 = arith.constant -1 : i32
    %85 = vector.broadcast %c-1_i32_37 : i32 to vector<1x64xi32>
    %86 = arith.addi %57, %85 : vector<1x64xi32>
    %c0_i32_38 = arith.constant 0 : i32
    %87 = vector.broadcast %c0_i32_38 : i32 to vector<1x64xi32>
    %88 = arith.cmpi sge, %86, %87 : vector<1x64xi32>
    %c-1_i32_39 = arith.constant -1 : i32
    %89 = vector.broadcast %c-1_i32_39 : i32 to vector<1x64xi32>
    %90 = arith.addi %57, %89 : vector<1x64xi32>
    %c7_i32_40 = arith.constant 7 : i32
    %91 = vector.broadcast %c7_i32_40 : i32 to vector<1x64xi32>
    %92 = arith.cmpi sle, %90, %91 : vector<1x64xi32>
    %93 = arith.andi %88, %92 : vector<1x64xi1>
    %c0_i32_41 = arith.constant 0 : i32
    %94 = vector.broadcast %c0_i32_41 : i32 to vector<1x64xi32>
    %95 = arith.addi %57, %94 : vector<1x64xi32>
    %c0_i32_42 = arith.constant 0 : i32
    %96 = vector.broadcast %c0_i32_42 : i32 to vector<1x64xi32>
    %97 = arith.cmpi sge, %95, %96 : vector<1x64xi32>
    %c0_i32_43 = arith.constant 0 : i32
    %98 = vector.broadcast %c0_i32_43 : i32 to vector<1x64xi32>
    %99 = arith.addi %57, %98 : vector<1x64xi32>
    %c7_i32_44 = arith.constant 7 : i32
    %100 = vector.broadcast %c7_i32_44 : i32 to vector<1x64xi32>
    %101 = arith.cmpi sle, %99, %100 : vector<1x64xi32>
    %102 = arith.andi %97, %101 : vector<1x64xi1>
    %c1_i32_45 = arith.constant 1 : i32
    %103 = vector.broadcast %c1_i32_45 : i32 to vector<1x64xi32>
    %104 = arith.addi %57, %103 : vector<1x64xi32>
    %c0_i32_46 = arith.constant 0 : i32
    %105 = vector.broadcast %c0_i32_46 : i32 to vector<1x64xi32>
    %106 = arith.cmpi sge, %104, %105 : vector<1x64xi32>
    %c1_i32_47 = arith.constant 1 : i32
    %107 = vector.broadcast %c1_i32_47 : i32 to vector<1x64xi32>
    %108 = arith.addi %57, %107 : vector<1x64xi32>
    %c7_i32_48 = arith.constant 7 : i32
    %109 = vector.broadcast %c7_i32_48 : i32 to vector<1x64xi32>
    %110 = arith.cmpi sle, %108, %109 : vector<1x64xi32>
    %111 = arith.andi %106, %110 : vector<1x64xi1>
    %c0_49 = arith.constant 0 : index
    %c0_50 = arith.constant 0 : index
    %112 = vector.load %arg1[%c0_49, %c0_50] : memref<4x256xf32, #tpu.memory_space<vmem>>, vector<4x256xf32>
    %c0_51 = arith.constant 0 : index
    %c0_52 = arith.constant 0 : index
    %113 = vector.load %arg4[%c0_51, %c0_52] : memref<8x36xf32, #tpu.memory_space<vmem>>, vector<8x36xf32>
    %c0_53 = arith.constant 0 : index
    %c0_54 = arith.constant 0 : index
    %114 = vector.load %arg5[%c0_53, %c0_54] : memref<8x1xf32, #tpu.memory_space<vmem>>, vector<8x1xf32>
    %115 = vector.extract_strided_slice %112 {offsets = [0, 239], sizes = [4, 17], strides = [1, 1]} : vector<4x256xf32> to vector<4x17xf32>
    %116 = vector.extract_strided_slice %112 {offsets = [0, 0], sizes = [4, 239], strides = [1, 1]} : vector<4x256xf32> to vector<4x239xf32>
    %117 = tpu.concatenate %115, %116 in 1 : vector<4x17xf32>, vector<4x239xf32> -> vector<4x256xf32>
    %118 = arith.andi %10, %37 : vector<1x256xi1>
    %cst = arith.constant 0.000000e+00 : f32
    %119 = vector.shape_cast %118 : vector<1x256xi1> to vector<1x256xi1>
    %120 = vector.broadcast %119 : vector<1x256xi1> to vector<4x256xi1>
    %121 = vector.broadcast %cst : f32 to vector<4x256xf32>
    %122 = arith.select %120, %117, %121 : vector<4x256xi1>, vector<4x256xf32>
    %123 = vector.extract_strided_slice %112 {offsets = [0, 240], sizes = [4, 16], strides = [1, 1]} : vector<4x256xf32> to vector<4x16xf32>
    %124 = vector.extract_strided_slice %112 {offsets = [0, 0], sizes = [4, 240], strides = [1, 1]} : vector<4x256xf32> to vector<4x240xf32>
    %125 = tpu.concatenate %123, %124 in 1 : vector<4x16xf32>, vector<4x240xf32> -> vector<4x256xf32>
    %126 = arith.andi %10, %46 : vector<1x256xi1>
    %cst_55 = arith.constant 0.000000e+00 : f32
    %127 = vector.shape_cast %126 : vector<1x256xi1> to vector<1x256xi1>
    %128 = vector.broadcast %127 : vector<1x256xi1> to vector<4x256xi1>
    %129 = vector.broadcast %cst_55 : f32 to vector<4x256xf32>
    %130 = arith.select %128, %125, %129 : vector<4x256xi1>, vector<4x256xf32>
    %131 = vector.extract_strided_slice %112 {offsets = [0, 241], sizes = [4, 15], strides = [1, 1]} : vector<4x256xf32> to vector<4x15xf32>
    %132 = vector.extract_strided_slice %112 {offsets = [0, 0], sizes = [4, 241], strides = [1, 1]} : vector<4x256xf32> to vector<4x241xf32>
    %133 = tpu.concatenate %131, %132 in 1 : vector<4x15xf32>, vector<4x241xf32> -> vector<4x256xf32>
    %134 = arith.andi %10, %55 : vector<1x256xi1>
    %cst_56 = arith.constant 0.000000e+00 : f32
    %135 = vector.shape_cast %134 : vector<1x256xi1> to vector<1x256xi1>
    %136 = vector.broadcast %135 : vector<1x256xi1> to vector<4x256xi1>
    %137 = vector.broadcast %cst_56 : f32 to vector<4x256xf32>
    %138 = arith.select %136, %133, %137 : vector<4x256xi1>, vector<4x256xf32>
    %139 = vector.extract_strided_slice %112 {offsets = [0, 255], sizes = [4, 1], strides = [1, 1]} : vector<4x256xf32> to vector<4x1xf32>
    %140 = vector.extract_strided_slice %112 {offsets = [0, 0], sizes = [4, 255], strides = [1, 1]} : vector<4x256xf32> to vector<4x255xf32>
    %141 = tpu.concatenate %139, %140 in 1 : vector<4x1xf32>, vector<4x255xf32> -> vector<4x256xf32>
    %142 = arith.andi %19, %37 : vector<1x256xi1>
    %cst_57 = arith.constant 0.000000e+00 : f32
    %143 = vector.shape_cast %142 : vector<1x256xi1> to vector<1x256xi1>
    %144 = vector.broadcast %143 : vector<1x256xi1> to vector<4x256xi1>
    %145 = vector.broadcast %cst_57 : f32 to vector<4x256xf32>
    %146 = arith.select %144, %141, %145 : vector<4x256xi1>, vector<4x256xf32>
    %147 = vector.extract_strided_slice %112 {offsets = [0, 1], sizes = [4, 255], strides = [1, 1]} : vector<4x256xf32> to vector<4x255xf32>
    %148 = vector.extract_strided_slice %112 {offsets = [0, 0], sizes = [4, 1], strides = [1, 1]} : vector<4x256xf32> to vector<4x1xf32>
    %149 = tpu.concatenate %147, %148 in 1 : vector<4x255xf32>, vector<4x1xf32> -> vector<4x256xf32>
    %150 = arith.andi %19, %55 : vector<1x256xi1>
    %cst_58 = arith.constant 0.000000e+00 : f32
    %151 = vector.shape_cast %150 : vector<1x256xi1> to vector<1x256xi1>
    %152 = vector.broadcast %151 : vector<1x256xi1> to vector<4x256xi1>
    %153 = vector.broadcast %cst_58 : f32 to vector<4x256xf32>
    %154 = arith.select %152, %149, %153 : vector<4x256xi1>, vector<4x256xf32>
    %155 = vector.extract_strided_slice %112 {offsets = [0, 15], sizes = [4, 241], strides = [1, 1]} : vector<4x256xf32> to vector<4x241xf32>
    %156 = vector.extract_strided_slice %112 {offsets = [0, 0], sizes = [4, 15], strides = [1, 1]} : vector<4x256xf32> to vector<4x15xf32>
    %157 = tpu.concatenate %155, %156 in 1 : vector<4x241xf32>, vector<4x15xf32> -> vector<4x256xf32>
    %158 = arith.andi %28, %37 : vector<1x256xi1>
    %cst_59 = arith.constant 0.000000e+00 : f32
    %159 = vector.shape_cast %158 : vector<1x256xi1> to vector<1x256xi1>
    %160 = vector.broadcast %159 : vector<1x256xi1> to vector<4x256xi1>
    %161 = vector.broadcast %cst_59 : f32 to vector<4x256xf32>
    %162 = arith.select %160, %157, %161 : vector<4x256xi1>, vector<4x256xf32>
    %163 = vector.extract_strided_slice %112 {offsets = [0, 16], sizes = [4, 240], strides = [1, 1]} : vector<4x256xf32> to vector<4x240xf32>
    %164 = vector.extract_strided_slice %112 {offsets = [0, 0], sizes = [4, 16], strides = [1, 1]} : vector<4x256xf32> to vector<4x16xf32>
    %165 = tpu.concatenate %163, %164 in 1 : vector<4x240xf32>, vector<4x16xf32> -> vector<4x256xf32>
    %166 = arith.andi %28, %46 : vector<1x256xi1>
    %cst_60 = arith.constant 0.000000e+00 : f32
    %167 = vector.shape_cast %166 : vector<1x256xi1> to vector<1x256xi1>
    %168 = vector.broadcast %167 : vector<1x256xi1> to vector<4x256xi1>
    %169 = vector.broadcast %cst_60 : f32 to vector<4x256xf32>
    %170 = arith.select %168, %165, %169 : vector<4x256xi1>, vector<4x256xf32>
    %171 = vector.extract_strided_slice %112 {offsets = [0, 17], sizes = [4, 239], strides = [1, 1]} : vector<4x256xf32> to vector<4x239xf32>
    %172 = vector.extract_strided_slice %112 {offsets = [0, 0], sizes = [4, 17], strides = [1, 1]} : vector<4x256xf32> to vector<4x17xf32>
    %173 = tpu.concatenate %171, %172 in 1 : vector<4x239xf32>, vector<4x17xf32> -> vector<4x256xf32>
    %174 = arith.andi %28, %55 : vector<1x256xi1>
    %cst_61 = arith.constant 0.000000e+00 : f32
    %175 = vector.shape_cast %174 : vector<1x256xi1> to vector<1x256xi1>
    %176 = vector.broadcast %175 : vector<1x256xi1> to vector<4x256xi1>
    %177 = vector.broadcast %cst_61 : f32 to vector<4x256xf32>
    %178 = arith.select %176, %173, %177 : vector<4x256xi1>, vector<4x256xf32>
    %179 = tpu.concatenate %122, %130, %138, %146, %112, %154, %162, %170, %178 in 0 : vector<4x256xf32>, vector<4x256xf32>, vector<4x256xf32>, vector<4x256xf32>, vector<4x256xf32>, vector<4x256xf32>, vector<4x256xf32>, vector<4x256xf32>, vector<4x256xf32> -> vector<36x256xf32>
    %cst_62 = arith.constant dense<0.000000e+00> : vector<8x256xf32>
    %180 = tpu.matmul %113, %179, %cst_62 {dimension_numbers = #tpu.dot_dimension_numbers<[1], [0], [0], [1], [0, 0, 1, 1], [], []>} : vector<8x36xf32>, vector<36x256xf32>, vector<8x256xf32> -> vector<8x256xf32>
    %181 = vector.broadcast %114 : vector<8x1xf32> to vector<8x256xf32>
    %182 = arith.addf %180, %181 : vector<8x256xf32>
    %c0_63 = arith.constant 0 : index
    %c0_64 = arith.constant 0 : index
    %183 = vector.load %arg8[%c0_63, %c0_64] : memref<256x64xf32, #tpu.memory_space<vmem>>, vector<256x64xf32>
    %184 = vector.extract_strided_slice %182 {offsets = [0, 240], sizes = [8, 16], strides = [1, 1]} : vector<8x256xf32> to vector<8x16xf32>
    %185 = vector.extract_strided_slice %182 {offsets = [0, 0], sizes = [8, 240], strides = [1, 1]} : vector<8x256xf32> to vector<8x240xf32>
    %186 = tpu.concatenate %184, %185 in 1 : vector<8x16xf32>, vector<8x240xf32> -> vector<8x256xf32>
    %cst_65 = arith.constant 0xFF800000 : f32
    %187 = vector.shape_cast %10 : vector<1x256xi1> to vector<1x256xi1>
    %188 = vector.broadcast %187 : vector<1x256xi1> to vector<8x256xi1>
    %189 = vector.broadcast %cst_65 : f32 to vector<8x256xf32>
    %190 = arith.select %188, %186, %189 : vector<8x256xi1>, vector<8x256xf32>
    %191 = arith.maximumf %182, %190 : vector<8x256xf32>
    %192 = vector.extract_strided_slice %182 {offsets = [0, 16], sizes = [8, 240], strides = [1, 1]} : vector<8x256xf32> to vector<8x240xf32>
    %193 = vector.extract_strided_slice %182 {offsets = [0, 0], sizes = [8, 16], strides = [1, 1]} : vector<8x256xf32> to vector<8x16xf32>
    %194 = tpu.concatenate %192, %193 in 1 : vector<8x240xf32>, vector<8x16xf32> -> vector<8x256xf32>
    %cst_66 = arith.constant 0xFF800000 : f32
    %195 = vector.shape_cast %28 : vector<1x256xi1> to vector<1x256xi1>
    %196 = vector.broadcast %195 : vector<1x256xi1> to vector<8x256xi1>
    %197 = vector.broadcast %cst_66 : f32 to vector<8x256xf32>
    %198 = arith.select %196, %194, %197 : vector<8x256xi1>, vector<8x256xf32>
    %199 = arith.maximumf %191, %198 : vector<8x256xf32>
    %200 = vector.extract_strided_slice %199 {offsets = [0, 255], sizes = [8, 1], strides = [1, 1]} : vector<8x256xf32> to vector<8x1xf32>
    %201 = vector.extract_strided_slice %199 {offsets = [0, 0], sizes = [8, 255], strides = [1, 1]} : vector<8x256xf32> to vector<8x255xf32>
    %202 = tpu.concatenate %200, %201 in 1 : vector<8x1xf32>, vector<8x255xf32> -> vector<8x256xf32>
    %cst_67 = arith.constant 0xFF800000 : f32
    %203 = vector.shape_cast %37 : vector<1x256xi1> to vector<1x256xi1>
    %204 = vector.broadcast %203 : vector<1x256xi1> to vector<8x256xi1>
    %205 = vector.broadcast %cst_67 : f32 to vector<8x256xf32>
    %206 = arith.select %204, %202, %205 : vector<8x256xi1>, vector<8x256xf32>
    %207 = arith.maximumf %199, %206 : vector<8x256xf32>
    %208 = vector.extract_strided_slice %199 {offsets = [0, 1], sizes = [8, 255], strides = [1, 1]} : vector<8x256xf32> to vector<8x255xf32>
    %209 = vector.extract_strided_slice %199 {offsets = [0, 0], sizes = [8, 1], strides = [1, 1]} : vector<8x256xf32> to vector<8x1xf32>
    %210 = tpu.concatenate %208, %209 in 1 : vector<8x255xf32>, vector<8x1xf32> -> vector<8x256xf32>
    %cst_68 = arith.constant 0xFF800000 : f32
    %211 = vector.shape_cast %55 : vector<1x256xi1> to vector<1x256xi1>
    %212 = vector.broadcast %211 : vector<1x256xi1> to vector<8x256xi1>
    %213 = vector.broadcast %cst_68 : f32 to vector<8x256xf32>
    %214 = arith.select %212, %210, %213 : vector<8x256xi1>, vector<8x256xf32>
    %215 = arith.maximumf %207, %214 : vector<8x256xf32>
    %cst_69 = arith.constant dense<0.000000e+00> : vector<8x64xf32>
    %216 = tpu.matmul %215, %183, %cst_69 {dimension_numbers = #tpu.dot_dimension_numbers<[1], [0], [0], [1], [0, 0, 1, 1], [], []>} : vector<8x256xf32>, vector<256x64xf32>, vector<8x64xf32> -> vector<8x64xf32>
    %cst_70 = arith.constant 0.000000e+00 : f32
    %217 = vector.broadcast %cst_70 : f32 to vector<8x64xf32>
    %218 = arith.maximumf %216, %217 : vector<8x64xf32>
    %c0_71 = arith.constant 0 : index
    %c0_72 = arith.constant 0 : index
    %c0_73 = arith.constant 0 : index
    %219 = vector.load %arg6[%c0_71, %c0_72, %c0_73] : memref<4x8x72xf32, #tpu.memory_space<vmem>>, vector<1x8x72xf32>
    %220 = vector.shape_cast %219 : vector<1x8x72xf32> to vector<8x72xf32>
    %c0_74 = arith.constant 0 : index
    %c0_75 = arith.constant 0 : index
    %c0_76 = arith.constant 0 : index
    %221 = vector.load %arg7[%c0_74, %c0_75, %c0_76] : memref<4x8x1xf32, #tpu.memory_space<vmem>>, vector<1x8x1xf32>
    %222 = vector.shape_cast %221 : vector<1x8x1xf32> to vector<8x1xf32>
    %223 = vector.extract_strided_slice %218 {offsets = [0, 55], sizes = [8, 9], strides = [1, 1]} : vector<8x64xf32> to vector<8x9xf32>
    %224 = vector.extract_strided_slice %218 {offsets = [0, 0], sizes = [8, 55], strides = [1, 1]} : vector<8x64xf32> to vector<8x55xf32>
    %225 = tpu.concatenate %223, %224 in 1 : vector<8x9xf32>, vector<8x55xf32> -> vector<8x64xf32>
    %226 = arith.andi %66, %93 : vector<1x64xi1>
    %cst_77 = arith.constant 0.000000e+00 : f32
    %227 = vector.shape_cast %226 : vector<1x64xi1> to vector<1x64xi1>
    %228 = vector.broadcast %227 : vector<1x64xi1> to vector<8x64xi1>
    %229 = vector.broadcast %cst_77 : f32 to vector<8x64xf32>
    %230 = arith.select %228, %225, %229 : vector<8x64xi1>, vector<8x64xf32>
    %231 = vector.extract_strided_slice %218 {offsets = [0, 56], sizes = [8, 8], strides = [1, 1]} : vector<8x64xf32> to vector<8x8xf32>
    %232 = vector.extract_strided_slice %218 {offsets = [0, 0], sizes = [8, 56], strides = [1, 1]} : vector<8x64xf32> to vector<8x56xf32>
    %233 = tpu.concatenate %231, %232 in 1 : vector<8x8xf32>, vector<8x56xf32> -> vector<8x64xf32>
    %234 = arith.andi %66, %102 : vector<1x64xi1>
    %cst_78 = arith.constant 0.000000e+00 : f32
    %235 = vector.shape_cast %234 : vector<1x64xi1> to vector<1x64xi1>
    %236 = vector.broadcast %235 : vector<1x64xi1> to vector<8x64xi1>
    %237 = vector.broadcast %cst_78 : f32 to vector<8x64xf32>
    %238 = arith.select %236, %233, %237 : vector<8x64xi1>, vector<8x64xf32>
    %239 = vector.extract_strided_slice %218 {offsets = [0, 57], sizes = [8, 7], strides = [1, 1]} : vector<8x64xf32> to vector<8x7xf32>
    %240 = vector.extract_strided_slice %218 {offsets = [0, 0], sizes = [8, 57], strides = [1, 1]} : vector<8x64xf32> to vector<8x57xf32>
    %241 = tpu.concatenate %239, %240 in 1 : vector<8x7xf32>, vector<8x57xf32> -> vector<8x64xf32>
    %242 = arith.andi %66, %111 : vector<1x64xi1>
    %cst_79 = arith.constant 0.000000e+00 : f32
    %243 = vector.shape_cast %242 : vector<1x64xi1> to vector<1x64xi1>
    %244 = vector.broadcast %243 : vector<1x64xi1> to vector<8x64xi1>
    %245 = vector.broadcast %cst_79 : f32 to vector<8x64xf32>
    %246 = arith.select %244, %241, %245 : vector<8x64xi1>, vector<8x64xf32>
    %247 = vector.extract_strided_slice %218 {offsets = [0, 63], sizes = [8, 1], strides = [1, 1]} : vector<8x64xf32> to vector<8x1xf32>
    %248 = vector.extract_strided_slice %218 {offsets = [0, 0], sizes = [8, 63], strides = [1, 1]} : vector<8x64xf32> to vector<8x63xf32>
    %249 = tpu.concatenate %247, %248 in 1 : vector<8x1xf32>, vector<8x63xf32> -> vector<8x64xf32>
    %250 = arith.andi %75, %93 : vector<1x64xi1>
    %cst_80 = arith.constant 0.000000e+00 : f32
    %251 = vector.shape_cast %250 : vector<1x64xi1> to vector<1x64xi1>
    %252 = vector.broadcast %251 : vector<1x64xi1> to vector<8x64xi1>
    %253 = vector.broadcast %cst_80 : f32 to vector<8x64xf32>
    %254 = arith.select %252, %249, %253 : vector<8x64xi1>, vector<8x64xf32>
    %255 = vector.extract_strided_slice %218 {offsets = [0, 1], sizes = [8, 63], strides = [1, 1]} : vector<8x64xf32> to vector<8x63xf32>
    %256 = vector.extract_strided_slice %218 {offsets = [0, 0], sizes = [8, 1], strides = [1, 1]} : vector<8x64xf32> to vector<8x1xf32>
    %257 = tpu.concatenate %255, %256 in 1 : vector<8x63xf32>, vector<8x1xf32> -> vector<8x64xf32>
    %258 = arith.andi %75, %111 : vector<1x64xi1>
    %cst_81 = arith.constant 0.000000e+00 : f32
    %259 = vector.shape_cast %258 : vector<1x64xi1> to vector<1x64xi1>
    %260 = vector.broadcast %259 : vector<1x64xi1> to vector<8x64xi1>
    %261 = vector.broadcast %cst_81 : f32 to vector<8x64xf32>
    %262 = arith.select %260, %257, %261 : vector<8x64xi1>, vector<8x64xf32>
    %263 = vector.extract_strided_slice %218 {offsets = [0, 7], sizes = [8, 57], strides = [1, 1]} : vector<8x64xf32> to vector<8x57xf32>
    %264 = vector.extract_strided_slice %218 {offsets = [0, 0], sizes = [8, 7], strides = [1, 1]} : vector<8x64xf32> to vector<8x7xf32>
    %265 = tpu.concatenate %263, %264 in 1 : vector<8x57xf32>, vector<8x7xf32> -> vector<8x64xf32>
    %266 = arith.andi %84, %93 : vector<1x64xi1>
    %cst_82 = arith.constant 0.000000e+00 : f32
    %267 = vector.shape_cast %266 : vector<1x64xi1> to vector<1x64xi1>
    %268 = vector.broadcast %267 : vector<1x64xi1> to vector<8x64xi1>
    %269 = vector.broadcast %cst_82 : f32 to vector<8x64xf32>
    %270 = arith.select %268, %265, %269 : vector<8x64xi1>, vector<8x64xf32>
    %271 = vector.extract_strided_slice %218 {offsets = [0, 8], sizes = [8, 56], strides = [1, 1]} : vector<8x64xf32> to vector<8x56xf32>
    %272 = vector.extract_strided_slice %218 {offsets = [0, 0], sizes = [8, 8], strides = [1, 1]} : vector<8x64xf32> to vector<8x8xf32>
    %273 = tpu.concatenate %271, %272 in 1 : vector<8x56xf32>, vector<8x8xf32> -> vector<8x64xf32>
    %274 = arith.andi %84, %102 : vector<1x64xi1>
    %cst_83 = arith.constant 0.000000e+00 : f32
    %275 = vector.shape_cast %274 : vector<1x64xi1> to vector<1x64xi1>
    %276 = vector.broadcast %275 : vector<1x64xi1> to vector<8x64xi1>
    %277 = vector.broadcast %cst_83 : f32 to vector<8x64xf32>
    %278 = arith.select %276, %273, %277 : vector<8x64xi1>, vector<8x64xf32>
    %279 = vector.extract_strided_slice %218 {offsets = [0, 9], sizes = [8, 55], strides = [1, 1]} : vector<8x64xf32> to vector<8x55xf32>
    %280 = vector.extract_strided_slice %218 {offsets = [0, 0], sizes = [8, 9], strides = [1, 1]} : vector<8x64xf32> to vector<8x9xf32>
    %281 = tpu.concatenate %279, %280 in 1 : vector<8x55xf32>, vector<8x9xf32> -> vector<8x64xf32>
    %282 = arith.andi %84, %111 : vector<1x64xi1>
    %cst_84 = arith.constant 0.000000e+00 : f32
    %283 = vector.shape_cast %282 : vector<1x64xi1> to vector<1x64xi1>
    %284 = vector.broadcast %283 : vector<1x64xi1> to vector<8x64xi1>
    %285 = vector.broadcast %cst_84 : f32 to vector<8x64xf32>
    %286 = arith.select %284, %281, %285 : vector<8x64xi1>, vector<8x64xf32>
    %287 = tpu.concatenate %230, %238, %246, %254, %218, %262, %270, %278, %286 in 0 : vector<8x64xf32>, vector<8x64xf32>, vector<8x64xf32>, vector<8x64xf32>, vector<8x64xf32>, vector<8x64xf32>, vector<8x64xf32>, vector<8x64xf32>, vector<8x64xf32> -> vector<72x64xf32>
    %cst_85 = arith.constant dense<0.000000e+00> : vector<8x64xf32>
    %288 = tpu.matmul %220, %287, %cst_85 {dimension_numbers = #tpu.dot_dimension_numbers<[1], [0], [0], [1], [0, 0, 1, 1], [], []>} : vector<8x72xf32>, vector<72x64xf32>, vector<8x64xf32> -> vector<8x64xf32>
    %289 = vector.broadcast %222 : vector<8x1xf32> to vector<8x64xf32>
    %290 = arith.addf %288, %289 : vector<8x64xf32>
    %cst_86 = arith.constant 0.000000e+00 : f32
    %291 = vector.broadcast %cst_86 : f32 to vector<8x64xf32>
    %292 = arith.maximumf %290, %291 : vector<8x64xf32>
    %c1_87 = arith.constant 1 : index
    %c0_88 = arith.constant 0 : index
    %c0_89 = arith.constant 0 : index
    %293 = vector.load %arg6[%c1_87, %c0_88, %c0_89] : memref<4x8x72xf32, #tpu.memory_space<vmem>>, vector<1x8x72xf32>
    %294 = vector.shape_cast %293 : vector<1x8x72xf32> to vector<8x72xf32>
    %c1_90 = arith.constant 1 : index
    %c0_91 = arith.constant 0 : index
    %c0_92 = arith.constant 0 : index
    %295 = vector.load %arg7[%c1_90, %c0_91, %c0_92] : memref<4x8x1xf32, #tpu.memory_space<vmem>>, vector<1x8x1xf32>
    %296 = vector.shape_cast %295 : vector<1x8x1xf32> to vector<8x1xf32>
    %297 = vector.extract_strided_slice %292 {offsets = [0, 55], sizes = [8, 9], strides = [1, 1]} : vector<8x64xf32> to vector<8x9xf32>
    %298 = vector.extract_strided_slice %292 {offsets = [0, 0], sizes = [8, 55], strides = [1, 1]} : vector<8x64xf32> to vector<8x55xf32>
    %299 = tpu.concatenate %297, %298 in 1 : vector<8x9xf32>, vector<8x55xf32> -> vector<8x64xf32>
    %300 = arith.andi %66, %93 : vector<1x64xi1>
    %cst_93 = arith.constant 0.000000e+00 : f32
    %301 = vector.shape_cast %300 : vector<1x64xi1> to vector<1x64xi1>
    %302 = vector.broadcast %301 : vector<1x64xi1> to vector<8x64xi1>
    %303 = vector.broadcast %cst_93 : f32 to vector<8x64xf32>
    %304 = arith.select %302, %299, %303 : vector<8x64xi1>, vector<8x64xf32>
    %305 = vector.extract_strided_slice %292 {offsets = [0, 56], sizes = [8, 8], strides = [1, 1]} : vector<8x64xf32> to vector<8x8xf32>
    %306 = vector.extract_strided_slice %292 {offsets = [0, 0], sizes = [8, 56], strides = [1, 1]} : vector<8x64xf32> to vector<8x56xf32>
    %307 = tpu.concatenate %305, %306 in 1 : vector<8x8xf32>, vector<8x56xf32> -> vector<8x64xf32>
    %308 = arith.andi %66, %102 : vector<1x64xi1>
    %cst_94 = arith.constant 0.000000e+00 : f32
    %309 = vector.shape_cast %308 : vector<1x64xi1> to vector<1x64xi1>
    %310 = vector.broadcast %309 : vector<1x64xi1> to vector<8x64xi1>
    %311 = vector.broadcast %cst_94 : f32 to vector<8x64xf32>
    %312 = arith.select %310, %307, %311 : vector<8x64xi1>, vector<8x64xf32>
    %313 = vector.extract_strided_slice %292 {offsets = [0, 57], sizes = [8, 7], strides = [1, 1]} : vector<8x64xf32> to vector<8x7xf32>
    %314 = vector.extract_strided_slice %292 {offsets = [0, 0], sizes = [8, 57], strides = [1, 1]} : vector<8x64xf32> to vector<8x57xf32>
    %315 = tpu.concatenate %313, %314 in 1 : vector<8x7xf32>, vector<8x57xf32> -> vector<8x64xf32>
    %316 = arith.andi %66, %111 : vector<1x64xi1>
    %cst_95 = arith.constant 0.000000e+00 : f32
    %317 = vector.shape_cast %316 : vector<1x64xi1> to vector<1x64xi1>
    %318 = vector.broadcast %317 : vector<1x64xi1> to vector<8x64xi1>
    %319 = vector.broadcast %cst_95 : f32 to vector<8x64xf32>
    %320 = arith.select %318, %315, %319 : vector<8x64xi1>, vector<8x64xf32>
    %321 = vector.extract_strided_slice %292 {offsets = [0, 63], sizes = [8, 1], strides = [1, 1]} : vector<8x64xf32> to vector<8x1xf32>
    %322 = vector.extract_strided_slice %292 {offsets = [0, 0], sizes = [8, 63], strides = [1, 1]} : vector<8x64xf32> to vector<8x63xf32>
    %323 = tpu.concatenate %321, %322 in 1 : vector<8x1xf32>, vector<8x63xf32> -> vector<8x64xf32>
    %324 = arith.andi %75, %93 : vector<1x64xi1>
    %cst_96 = arith.constant 0.000000e+00 : f32
    %325 = vector.shape_cast %324 : vector<1x64xi1> to vector<1x64xi1>
    %326 = vector.broadcast %325 : vector<1x64xi1> to vector<8x64xi1>
    %327 = vector.broadcast %cst_96 : f32 to vector<8x64xf32>
    %328 = arith.select %326, %323, %327 : vector<8x64xi1>, vector<8x64xf32>
    %329 = vector.extract_strided_slice %292 {offsets = [0, 1], sizes = [8, 63], strides = [1, 1]} : vector<8x64xf32> to vector<8x63xf32>
    %330 = vector.extract_strided_slice %292 {offsets = [0, 0], sizes = [8, 1], strides = [1, 1]} : vector<8x64xf32> to vector<8x1xf32>
    %331 = tpu.concatenate %329, %330 in 1 : vector<8x63xf32>, vector<8x1xf32> -> vector<8x64xf32>
    %332 = arith.andi %75, %111 : vector<1x64xi1>
    %cst_97 = arith.constant 0.000000e+00 : f32
    %333 = vector.shape_cast %332 : vector<1x64xi1> to vector<1x64xi1>
    %334 = vector.broadcast %333 : vector<1x64xi1> to vector<8x64xi1>
    %335 = vector.broadcast %cst_97 : f32 to vector<8x64xf32>
    %336 = arith.select %334, %331, %335 : vector<8x64xi1>, vector<8x64xf32>
    %337 = vector.extract_strided_slice %292 {offsets = [0, 7], sizes = [8, 57], strides = [1, 1]} : vector<8x64xf32> to vector<8x57xf32>
    %338 = vector.extract_strided_slice %292 {offsets = [0, 0], sizes = [8, 7], strides = [1, 1]} : vector<8x64xf32> to vector<8x7xf32>
    %339 = tpu.concatenate %337, %338 in 1 : vector<8x57xf32>, vector<8x7xf32> -> vector<8x64xf32>
    %340 = arith.andi %84, %93 : vector<1x64xi1>
    %cst_98 = arith.constant 0.000000e+00 : f32
    %341 = vector.shape_cast %340 : vector<1x64xi1> to vector<1x64xi1>
    %342 = vector.broadcast %341 : vector<1x64xi1> to vector<8x64xi1>
    %343 = vector.broadcast %cst_98 : f32 to vector<8x64xf32>
    %344 = arith.select %342, %339, %343 : vector<8x64xi1>, vector<8x64xf32>
    %345 = vector.extract_strided_slice %292 {offsets = [0, 8], sizes = [8, 56], strides = [1, 1]} : vector<8x64xf32> to vector<8x56xf32>
    %346 = vector.extract_strided_slice %292 {offsets = [0, 0], sizes = [8, 8], strides = [1, 1]} : vector<8x64xf32> to vector<8x8xf32>
    %347 = tpu.concatenate %345, %346 in 1 : vector<8x56xf32>, vector<8x8xf32> -> vector<8x64xf32>
    %348 = arith.andi %84, %102 : vector<1x64xi1>
    %cst_99 = arith.constant 0.000000e+00 : f32
    %349 = vector.shape_cast %348 : vector<1x64xi1> to vector<1x64xi1>
    %350 = vector.broadcast %349 : vector<1x64xi1> to vector<8x64xi1>
    %351 = vector.broadcast %cst_99 : f32 to vector<8x64xf32>
    %352 = arith.select %350, %347, %351 : vector<8x64xi1>, vector<8x64xf32>
    %353 = vector.extract_strided_slice %292 {offsets = [0, 9], sizes = [8, 55], strides = [1, 1]} : vector<8x64xf32> to vector<8x55xf32>
    %354 = vector.extract_strided_slice %292 {offsets = [0, 0], sizes = [8, 9], strides = [1, 1]} : vector<8x64xf32> to vector<8x9xf32>
    %355 = tpu.concatenate %353, %354 in 1 : vector<8x55xf32>, vector<8x9xf32> -> vector<8x64xf32>
    %356 = arith.andi %84, %111 : vector<1x64xi1>
    %cst_100 = arith.constant 0.000000e+00 : f32
    %357 = vector.shape_cast %356 : vector<1x64xi1> to vector<1x64xi1>
    %358 = vector.broadcast %357 : vector<1x64xi1> to vector<8x64xi1>
    %359 = vector.broadcast %cst_100 : f32 to vector<8x64xf32>
    %360 = arith.select %358, %355, %359 : vector<8x64xi1>, vector<8x64xf32>
    %361 = tpu.concatenate %304, %312, %320, %328, %292, %336, %344, %352, %360 in 0 : vector<8x64xf32>, vector<8x64xf32>, vector<8x64xf32>, vector<8x64xf32>, vector<8x64xf32>, vector<8x64xf32>, vector<8x64xf32>, vector<8x64xf32>, vector<8x64xf32> -> vector<72x64xf32>
    %cst_101 = arith.constant dense<0.000000e+00> : vector<8x64xf32>
    %362 = tpu.matmul %294, %361, %cst_101 {dimension_numbers = #tpu.dot_dimension_numbers<[1], [0], [0], [1], [0, 0, 1, 1], [], []>} : vector<8x72xf32>, vector<72x64xf32>, vector<8x64xf32> -> vector<8x64xf32>
    %363 = vector.broadcast %296 : vector<8x1xf32> to vector<8x64xf32>
    %364 = arith.addf %362, %363 : vector<8x64xf32>
    %365 = arith.addf %216, %364 : vector<8x64xf32>
    %cst_102 = arith.constant 0.000000e+00 : f32
    %366 = vector.broadcast %cst_102 : f32 to vector<8x64xf32>
    %367 = arith.maximumf %365, %366 : vector<8x64xf32>
    %c2 = arith.constant 2 : index
    %c0_103 = arith.constant 0 : index
    %c0_104 = arith.constant 0 : index
    %368 = vector.load %arg6[%c2, %c0_103, %c0_104] : memref<4x8x72xf32, #tpu.memory_space<vmem>>, vector<1x8x72xf32>
    %369 = vector.shape_cast %368 : vector<1x8x72xf32> to vector<8x72xf32>
    %c2_105 = arith.constant 2 : index
    %c0_106 = arith.constant 0 : index
    %c0_107 = arith.constant 0 : index
    %370 = vector.load %arg7[%c2_105, %c0_106, %c0_107] : memref<4x8x1xf32, #tpu.memory_space<vmem>>, vector<1x8x1xf32>
    %371 = vector.shape_cast %370 : vector<1x8x1xf32> to vector<8x1xf32>
    %372 = vector.extract_strided_slice %367 {offsets = [0, 55], sizes = [8, 9], strides = [1, 1]} : vector<8x64xf32> to vector<8x9xf32>
    %373 = vector.extract_strided_slice %367 {offsets = [0, 0], sizes = [8, 55], strides = [1, 1]} : vector<8x64xf32> to vector<8x55xf32>
    %374 = tpu.concatenate %372, %373 in 1 : vector<8x9xf32>, vector<8x55xf32> -> vector<8x64xf32>
    %375 = arith.andi %66, %93 : vector<1x64xi1>
    %cst_108 = arith.constant 0.000000e+00 : f32
    %376 = vector.shape_cast %375 : vector<1x64xi1> to vector<1x64xi1>
    %377 = vector.broadcast %376 : vector<1x64xi1> to vector<8x64xi1>
    %378 = vector.broadcast %cst_108 : f32 to vector<8x64xf32>
    %379 = arith.select %377, %374, %378 : vector<8x64xi1>, vector<8x64xf32>
    %380 = vector.extract_strided_slice %367 {offsets = [0, 56], sizes = [8, 8], strides = [1, 1]} : vector<8x64xf32> to vector<8x8xf32>
    %381 = vector.extract_strided_slice %367 {offsets = [0, 0], sizes = [8, 56], strides = [1, 1]} : vector<8x64xf32> to vector<8x56xf32>
    %382 = tpu.concatenate %380, %381 in 1 : vector<8x8xf32>, vector<8x56xf32> -> vector<8x64xf32>
    %383 = arith.andi %66, %102 : vector<1x64xi1>
    %cst_109 = arith.constant 0.000000e+00 : f32
    %384 = vector.shape_cast %383 : vector<1x64xi1> to vector<1x64xi1>
    %385 = vector.broadcast %384 : vector<1x64xi1> to vector<8x64xi1>
    %386 = vector.broadcast %cst_109 : f32 to vector<8x64xf32>
    %387 = arith.select %385, %382, %386 : vector<8x64xi1>, vector<8x64xf32>
    %388 = vector.extract_strided_slice %367 {offsets = [0, 57], sizes = [8, 7], strides = [1, 1]} : vector<8x64xf32> to vector<8x7xf32>
    %389 = vector.extract_strided_slice %367 {offsets = [0, 0], sizes = [8, 57], strides = [1, 1]} : vector<8x64xf32> to vector<8x57xf32>
    %390 = tpu.concatenate %388, %389 in 1 : vector<8x7xf32>, vector<8x57xf32> -> vector<8x64xf32>
    %391 = arith.andi %66, %111 : vector<1x64xi1>
    %cst_110 = arith.constant 0.000000e+00 : f32
    %392 = vector.shape_cast %391 : vector<1x64xi1> to vector<1x64xi1>
    %393 = vector.broadcast %392 : vector<1x64xi1> to vector<8x64xi1>
    %394 = vector.broadcast %cst_110 : f32 to vector<8x64xf32>
    %395 = arith.select %393, %390, %394 : vector<8x64xi1>, vector<8x64xf32>
    %396 = vector.extract_strided_slice %367 {offsets = [0, 63], sizes = [8, 1], strides = [1, 1]} : vector<8x64xf32> to vector<8x1xf32>
    %397 = vector.extract_strided_slice %367 {offsets = [0, 0], sizes = [8, 63], strides = [1, 1]} : vector<8x64xf32> to vector<8x63xf32>
    %398 = tpu.concatenate %396, %397 in 1 : vector<8x1xf32>, vector<8x63xf32> -> vector<8x64xf32>
    %399 = arith.andi %75, %93 : vector<1x64xi1>
    %cst_111 = arith.constant 0.000000e+00 : f32
    %400 = vector.shape_cast %399 : vector<1x64xi1> to vector<1x64xi1>
    %401 = vector.broadcast %400 : vector<1x64xi1> to vector<8x64xi1>
    %402 = vector.broadcast %cst_111 : f32 to vector<8x64xf32>
    %403 = arith.select %401, %398, %402 : vector<8x64xi1>, vector<8x64xf32>
    %404 = vector.extract_strided_slice %367 {offsets = [0, 1], sizes = [8, 63], strides = [1, 1]} : vector<8x64xf32> to vector<8x63xf32>
    %405 = vector.extract_strided_slice %367 {offsets = [0, 0], sizes = [8, 1], strides = [1, 1]} : vector<8x64xf32> to vector<8x1xf32>
    %406 = tpu.concatenate %404, %405 in 1 : vector<8x63xf32>, vector<8x1xf32> -> vector<8x64xf32>
    %407 = arith.andi %75, %111 : vector<1x64xi1>
    %cst_112 = arith.constant 0.000000e+00 : f32
    %408 = vector.shape_cast %407 : vector<1x64xi1> to vector<1x64xi1>
    %409 = vector.broadcast %408 : vector<1x64xi1> to vector<8x64xi1>
    %410 = vector.broadcast %cst_112 : f32 to vector<8x64xf32>
    %411 = arith.select %409, %406, %410 : vector<8x64xi1>, vector<8x64xf32>
    %412 = vector.extract_strided_slice %367 {offsets = [0, 7], sizes = [8, 57], strides = [1, 1]} : vector<8x64xf32> to vector<8x57xf32>
    %413 = vector.extract_strided_slice %367 {offsets = [0, 0], sizes = [8, 7], strides = [1, 1]} : vector<8x64xf32> to vector<8x7xf32>
    %414 = tpu.concatenate %412, %413 in 1 : vector<8x57xf32>, vector<8x7xf32> -> vector<8x64xf32>
    %415 = arith.andi %84, %93 : vector<1x64xi1>
    %cst_113 = arith.constant 0.000000e+00 : f32
    %416 = vector.shape_cast %415 : vector<1x64xi1> to vector<1x64xi1>
    %417 = vector.broadcast %416 : vector<1x64xi1> to vector<8x64xi1>
    %418 = vector.broadcast %cst_113 : f32 to vector<8x64xf32>
    %419 = arith.select %417, %414, %418 : vector<8x64xi1>, vector<8x64xf32>
    %420 = vector.extract_strided_slice %367 {offsets = [0, 8], sizes = [8, 56], strides = [1, 1]} : vector<8x64xf32> to vector<8x56xf32>
    %421 = vector.extract_strided_slice %367 {offsets = [0, 0], sizes = [8, 8], strides = [1, 1]} : vector<8x64xf32> to vector<8x8xf32>
    %422 = tpu.concatenate %420, %421 in 1 : vector<8x56xf32>, vector<8x8xf32> -> vector<8x64xf32>
    %423 = arith.andi %84, %102 : vector<1x64xi1>
    %cst_114 = arith.constant 0.000000e+00 : f32
    %424 = vector.shape_cast %423 : vector<1x64xi1> to vector<1x64xi1>
    %425 = vector.broadcast %424 : vector<1x64xi1> to vector<8x64xi1>
    %426 = vector.broadcast %cst_114 : f32 to vector<8x64xf32>
    %427 = arith.select %425, %422, %426 : vector<8x64xi1>, vector<8x64xf32>
    %428 = vector.extract_strided_slice %367 {offsets = [0, 9], sizes = [8, 55], strides = [1, 1]} : vector<8x64xf32> to vector<8x55xf32>
    %429 = vector.extract_strided_slice %367 {offsets = [0, 0], sizes = [8, 9], strides = [1, 1]} : vector<8x64xf32> to vector<8x9xf32>
    %430 = tpu.concatenate %428, %429 in 1 : vector<8x55xf32>, vector<8x9xf32> -> vector<8x64xf32>
    %431 = arith.andi %84, %111 : vector<1x64xi1>
    %cst_115 = arith.constant 0.000000e+00 : f32
    %432 = vector.shape_cast %431 : vector<1x64xi1> to vector<1x64xi1>
    %433 = vector.broadcast %432 : vector<1x64xi1> to vector<8x64xi1>
    %434 = vector.broadcast %cst_115 : f32 to vector<8x64xf32>
    %435 = arith.select %433, %430, %434 : vector<8x64xi1>, vector<8x64xf32>
    %436 = tpu.concatenate %379, %387, %395, %403, %367, %411, %419, %427, %435 in 0 : vector<8x64xf32>, vector<8x64xf32>, vector<8x64xf32>, vector<8x64xf32>, vector<8x64xf32>, vector<8x64xf32>, vector<8x64xf32>, vector<8x64xf32>, vector<8x64xf32> -> vector<72x64xf32>
    %cst_116 = arith.constant dense<0.000000e+00> : vector<8x64xf32>
    %437 = tpu.matmul %369, %436, %cst_116 {dimension_numbers = #tpu.dot_dimension_numbers<[1], [0], [0], [1], [0, 0, 1, 1], [], []>} : vector<8x72xf32>, vector<72x64xf32>, vector<8x64xf32> -> vector<8x64xf32>
    %438 = vector.broadcast %371 : vector<8x1xf32> to vector<8x64xf32>
    %439 = arith.addf %437, %438 : vector<8x64xf32>
    %cst_117 = arith.constant 0.000000e+00 : f32
    %440 = vector.broadcast %cst_117 : f32 to vector<8x64xf32>
    %441 = arith.maximumf %439, %440 : vector<8x64xf32>
    %c3 = arith.constant 3 : index
    %c0_118 = arith.constant 0 : index
    %c0_119 = arith.constant 0 : index
    %442 = vector.load %arg6[%c3, %c0_118, %c0_119] : memref<4x8x72xf32, #tpu.memory_space<vmem>>, vector<1x8x72xf32>
    %443 = vector.shape_cast %442 : vector<1x8x72xf32> to vector<8x72xf32>
    %c3_120 = arith.constant 3 : index
    %c0_121 = arith.constant 0 : index
    %c0_122 = arith.constant 0 : index
    %444 = vector.load %arg7[%c3_120, %c0_121, %c0_122] : memref<4x8x1xf32, #tpu.memory_space<vmem>>, vector<1x8x1xf32>
    %445 = vector.shape_cast %444 : vector<1x8x1xf32> to vector<8x1xf32>
    %446 = vector.extract_strided_slice %441 {offsets = [0, 55], sizes = [8, 9], strides = [1, 1]} : vector<8x64xf32> to vector<8x9xf32>
    %447 = vector.extract_strided_slice %441 {offsets = [0, 0], sizes = [8, 55], strides = [1, 1]} : vector<8x64xf32> to vector<8x55xf32>
    %448 = tpu.concatenate %446, %447 in 1 : vector<8x9xf32>, vector<8x55xf32> -> vector<8x64xf32>
    %449 = arith.andi %66, %93 : vector<1x64xi1>
    %cst_123 = arith.constant 0.000000e+00 : f32
    %450 = vector.shape_cast %449 : vector<1x64xi1> to vector<1x64xi1>
    %451 = vector.broadcast %450 : vector<1x64xi1> to vector<8x64xi1>
    %452 = vector.broadcast %cst_123 : f32 to vector<8x64xf32>
    %453 = arith.select %451, %448, %452 : vector<8x64xi1>, vector<8x64xf32>
    %454 = vector.extract_strided_slice %441 {offsets = [0, 56], sizes = [8, 8], strides = [1, 1]} : vector<8x64xf32> to vector<8x8xf32>
    %455 = vector.extract_strided_slice %441 {offsets = [0, 0], sizes = [8, 56], strides = [1, 1]} : vector<8x64xf32> to vector<8x56xf32>
    %456 = tpu.concatenate %454, %455 in 1 : vector<8x8xf32>, vector<8x56xf32> -> vector<8x64xf32>
    %457 = arith.andi %66, %102 : vector<1x64xi1>
    %cst_124 = arith.constant 0.000000e+00 : f32
    %458 = vector.shape_cast %457 : vector<1x64xi1> to vector<1x64xi1>
    %459 = vector.broadcast %458 : vector<1x64xi1> to vector<8x64xi1>
    %460 = vector.broadcast %cst_124 : f32 to vector<8x64xf32>
    %461 = arith.select %459, %456, %460 : vector<8x64xi1>, vector<8x64xf32>
    %462 = vector.extract_strided_slice %441 {offsets = [0, 57], sizes = [8, 7], strides = [1, 1]} : vector<8x64xf32> to vector<8x7xf32>
    %463 = vector.extract_strided_slice %441 {offsets = [0, 0], sizes = [8, 57], strides = [1, 1]} : vector<8x64xf32> to vector<8x57xf32>
    %464 = tpu.concatenate %462, %463 in 1 : vector<8x7xf32>, vector<8x57xf32> -> vector<8x64xf32>
    %465 = arith.andi %66, %111 : vector<1x64xi1>
    %cst_125 = arith.constant 0.000000e+00 : f32
    %466 = vector.shape_cast %465 : vector<1x64xi1> to vector<1x64xi1>
    %467 = vector.broadcast %466 : vector<1x64xi1> to vector<8x64xi1>
    %468 = vector.broadcast %cst_125 : f32 to vector<8x64xf32>
    %469 = arith.select %467, %464, %468 : vector<8x64xi1>, vector<8x64xf32>
    %470 = vector.extract_strided_slice %441 {offsets = [0, 63], sizes = [8, 1], strides = [1, 1]} : vector<8x64xf32> to vector<8x1xf32>
    %471 = vector.extract_strided_slice %441 {offsets = [0, 0], sizes = [8, 63], strides = [1, 1]} : vector<8x64xf32> to vector<8x63xf32>
    %472 = tpu.concatenate %470, %471 in 1 : vector<8x1xf32>, vector<8x63xf32> -> vector<8x64xf32>
    %473 = arith.andi %75, %93 : vector<1x64xi1>
    %cst_126 = arith.constant 0.000000e+00 : f32
    %474 = vector.shape_cast %473 : vector<1x64xi1> to vector<1x64xi1>
    %475 = vector.broadcast %474 : vector<1x64xi1> to vector<8x64xi1>
    %476 = vector.broadcast %cst_126 : f32 to vector<8x64xf32>
    %477 = arith.select %475, %472, %476 : vector<8x64xi1>, vector<8x64xf32>
    %478 = vector.extract_strided_slice %441 {offsets = [0, 1], sizes = [8, 63], strides = [1, 1]} : vector<8x64xf32> to vector<8x63xf32>
    %479 = vector.extract_strided_slice %441 {offsets = [0, 0], sizes = [8, 1], strides = [1, 1]} : vector<8x64xf32> to vector<8x1xf32>
    %480 = tpu.concatenate %478, %479 in 1 : vector<8x63xf32>, vector<8x1xf32> -> vector<8x64xf32>
    %481 = arith.andi %75, %111 : vector<1x64xi1>
    %cst_127 = arith.constant 0.000000e+00 : f32
    %482 = vector.shape_cast %481 : vector<1x64xi1> to vector<1x64xi1>
    %483 = vector.broadcast %482 : vector<1x64xi1> to vector<8x64xi1>
    %484 = vector.broadcast %cst_127 : f32 to vector<8x64xf32>
    %485 = arith.select %483, %480, %484 : vector<8x64xi1>, vector<8x64xf32>
    %486 = vector.extract_strided_slice %441 {offsets = [0, 7], sizes = [8, 57], strides = [1, 1]} : vector<8x64xf32> to vector<8x57xf32>
    %487 = vector.extract_strided_slice %441 {offsets = [0, 0], sizes = [8, 7], strides = [1, 1]} : vector<8x64xf32> to vector<8x7xf32>
    %488 = tpu.concatenate %486, %487 in 1 : vector<8x57xf32>, vector<8x7xf32> -> vector<8x64xf32>
    %489 = arith.andi %84, %93 : vector<1x64xi1>
    %cst_128 = arith.constant 0.000000e+00 : f32
    %490 = vector.shape_cast %489 : vector<1x64xi1> to vector<1x64xi1>
    %491 = vector.broadcast %490 : vector<1x64xi1> to vector<8x64xi1>
    %492 = vector.broadcast %cst_128 : f32 to vector<8x64xf32>
    %493 = arith.select %491, %488, %492 : vector<8x64xi1>, vector<8x64xf32>
    %494 = vector.extract_strided_slice %441 {offsets = [0, 8], sizes = [8, 56], strides = [1, 1]} : vector<8x64xf32> to vector<8x56xf32>
    %495 = vector.extract_strided_slice %441 {offsets = [0, 0], sizes = [8, 8], strides = [1, 1]} : vector<8x64xf32> to vector<8x8xf32>
    %496 = tpu.concatenate %494, %495 in 1 : vector<8x56xf32>, vector<8x8xf32> -> vector<8x64xf32>
    %497 = arith.andi %84, %102 : vector<1x64xi1>
    %cst_129 = arith.constant 0.000000e+00 : f32
    %498 = vector.shape_cast %497 : vector<1x64xi1> to vector<1x64xi1>
    %499 = vector.broadcast %498 : vector<1x64xi1> to vector<8x64xi1>
    %500 = vector.broadcast %cst_129 : f32 to vector<8x64xf32>
    %501 = arith.select %499, %496, %500 : vector<8x64xi1>, vector<8x64xf32>
    %502 = vector.extract_strided_slice %441 {offsets = [0, 9], sizes = [8, 55], strides = [1, 1]} : vector<8x64xf32> to vector<8x55xf32>
    %503 = vector.extract_strided_slice %441 {offsets = [0, 0], sizes = [8, 9], strides = [1, 1]} : vector<8x64xf32> to vector<8x9xf32>
    %504 = tpu.concatenate %502, %503 in 1 : vector<8x55xf32>, vector<8x9xf32> -> vector<8x64xf32>
    %505 = arith.andi %84, %111 : vector<1x64xi1>
    %cst_130 = arith.constant 0.000000e+00 : f32
    %506 = vector.shape_cast %505 : vector<1x64xi1> to vector<1x64xi1>
    %507 = vector.broadcast %506 : vector<1x64xi1> to vector<8x64xi1>
    %508 = vector.broadcast %cst_130 : f32 to vector<8x64xf32>
    %509 = arith.select %507, %504, %508 : vector<8x64xi1>, vector<8x64xf32>
    %510 = tpu.concatenate %453, %461, %469, %477, %441, %485, %493, %501, %509 in 0 : vector<8x64xf32>, vector<8x64xf32>, vector<8x64xf32>, vector<8x64xf32>, vector<8x64xf32>, vector<8x64xf32>, vector<8x64xf32>, vector<8x64xf32>, vector<8x64xf32> -> vector<72x64xf32>
    %cst_131 = arith.constant dense<0.000000e+00> : vector<8x64xf32>
    %511 = tpu.matmul %443, %510, %cst_131 {dimension_numbers = #tpu.dot_dimension_numbers<[1], [0], [0], [1], [0, 0, 1, 1], [], []>} : vector<8x72xf32>, vector<72x64xf32>, vector<8x64xf32> -> vector<8x64xf32>
    %512 = vector.broadcast %445 : vector<8x1xf32> to vector<8x64xf32>
    %513 = arith.addf %511, %512 : vector<8x64xf32>
    %514 = arith.addf %365, %513 : vector<8x64xf32>
    %515 = vector.shape_cast %514 : vector<8x64xf32> to vector<1x8x64xf32>
    %c0_132 = arith.constant 0 : index
    %c0_133 = arith.constant 0 : index
    %c0_134 = arith.constant 0 : index
    %516 = vector.load %arg9[%c0_132, %c0_133, %c0_134] : memref<1x8x64xf32, #tpu.memory_space<vmem>>, vector<1x8x64xf32>
    tpu.vector_store %arg9[%c0_132, %c0_133, %c0_134], %515 {strides = array<i32>} : memref<1x8x64xf32, #tpu.memory_space<vmem>>, vector<1x8x64xf32>,
    return
  }
  func.func @transform_0(%arg0: i32) -> (i32, i32) {
    %c0_i32 = arith.constant 0 : i32
    %c0_i32_0 = arith.constant 0 : i32
    return %c0_i32, %arg0 : i32, i32
  }
  func.func @transform_1(%arg0: i32) -> (i32, i32) {
    %c0_i32 = arith.constant 0 : i32
    %c0_i32_0 = arith.constant 0 : i32
    %c0_i32_1 = arith.constant 0 : i32
    return %c0_i32, %c0_i32_0 : i32, i32
  }
  func.func @transform_2(%arg0: i32) -> (i32, i32) {
    %c0_i32 = arith.constant 0 : i32
    %c0_i32_0 = arith.constant 0 : i32
    %c0_i32_1 = arith.constant 0 : i32
    return %c0_i32, %c0_i32_0 : i32, i32
  }
  func.func @transform_3(%arg0: i32) -> (i32, i32) {
    %c0_i32 = arith.constant 0 : i32
    %c0_i32_0 = arith.constant 0 : i32
    %c0_i32_1 = arith.constant 0 : i32
    return %c0_i32, %c0_i32_0 : i32, i32
  }
  func.func @transform_4(%arg0: i32) -> (i32, i32) {
    %c0_i32 = arith.constant 0 : i32
    %c0_i32_0 = arith.constant 0 : i32
    %c0_i32_1 = arith.constant 0 : i32
    return %c0_i32, %c0_i32_0 : i32, i32
  }
  func.func @transform_5(%arg0: i32) -> (i32, i32, i32) {
    %c0_i32 = arith.constant 0 : i32
    %c0_i32_0 = arith.constant 0 : i32
    %c0_i32_1 = arith.constant 0 : i32
    %c0_i32_2 = arith.constant 0 : i32
    return %c0_i32, %c0_i32_0, %c0_i32_1 : i32, i32, i32
  }
  func.func @transform_6(%arg0: i32) -> (i32, i32, i32) {
    %c0_i32 = arith.constant 0 : i32
    %c0_i32_0 = arith.constant 0 : i32
    %c0_i32_1 = arith.constant 0 : i32
    %c0_i32_2 = arith.constant 0 : i32
    return %c0_i32, %c0_i32_0, %c0_i32_1 : i32, i32, i32
  }
  func.func @transform_7(%arg0: i32) -> (i32, i32) {
    %c0_i32 = arith.constant 0 : i32
    %c0_i32_0 = arith.constant 0 : i32
    %c0_i32_1 = arith.constant 0 : i32
    return %c0_i32, %c0_i32_0 : i32, i32
  }
  func.func @transform_8(%arg0: i32) -> (i32, i32, i32) {
    %c0_i32 = arith.constant 0 : i32
    %c0_i32_0 = arith.constant 0 : i32
    %c0_i32_1 = arith.constant 0 : i32
    return %arg0, %c0_i32, %c0_i32_0 : i32, i32, i32
  }
}

</mosaic_0001>

<llo_original>
// kernel: conv_sequence_forward.1
$region0: #{conv_sequence_forward.1}
  #allocation0 [shape = 'u32[]', space=smem, size = 0x4, offset = 0x4, fixed_abs, tag = 'smem constant byte address 0x4 - core index']
  #allocation1 [shape = 'u32[144,128]{1,0:T(1,128)}', space=vmem, size = 0x12000, scoped, tag = 'internal scratch']
  %s0 = inlined_call_operand.vmem [shape: f32[4,512], index: 0, kind: input, shape index: {}]
  %s1 = inlined_call_operand.vmem [shape: s32[2,256], index: 1, kind: input, shape index: {}]
  %s2 = inlined_call_operand.vmem [shape: s32[2,64], index: 2, kind: input, shape index: {}]
  %s3 = inlined_call_operand.vmem [shape: f32[8,36], index: 3, kind: input, shape index: {}]
  %s4 = inlined_call_operand.vmem [shape: f32[8,1], index: 4, kind: input, shape index: {}]
  %s5 = inlined_call_operand.vmem [shape: f32[4,8,72], index: 5, kind: input, shape index: {}]
  %s6 = inlined_call_operand.vmem [shape: f32[4,8,1], index: 6, kind: input, shape index: {}]
  %s7 = inlined_call_operand.vmem [shape: f32[256,64], index: 7, kind: input, shape index: {}]
  %s8 = inlined_call_operand.vmem [shape: f32[2,8,64], index: 8, kind: output, shape index: {}]
  %s9 = sld [smem:[#allocation0]]
  $region65: #{conv_sequence_forward.1} parent=0
    _
  %s11 = ssub.s32 1, %s9
  %s12 = scalar_select 0, %s11, %s9
  loop: start=0, step=1, limit=4
  $region2: #{conv_sequence_forward.1} parent=0 // loop_pre_header
    _
  $region3: #{conv_sequence_forward.1} parent=0 // loop_header
    %s14 = sphi 0, %s18
    %p15 = scmp.ge.s32.totalorder %s14, 4
    %s24 = sphi 0, %s26
    %s27 = sphi 0, %s24
    %s28 = sphi 0, %s27
    %s44 = sphi 0, %s28
    %s48 = sphi 0, %s48
    %s50 = sphi 0, %s48
    %s51 = sphi 0, %s50
    %s65 = sphi 0, %s51
    %s69 = sphi 0, %s69
    %s71 = sphi 0, %s69
    %s72 = sphi 0, %s71
    %s86 = sphi 0, %s72
    %s90 = sphi 0, %s90
    %s92 = sphi 0, %s90
    %s93 = sphi 0, %s92
    %s107 = sphi 0, %s93
    %s111 = sphi 0, %s111
    %s113 = sphi 0, %s111
    %s114 = sphi 0, %s113
    %s128 = sphi 0, %s114
    %s132 = sphi 0, %s132
    %s134 = sphi 0, %s132
    %s135 = sphi 0, %s134
    %s149 = sphi 0, %s135
    %s153 = sphi 0, %s153
    %s155 = sphi 0, %s153
    %s156 = sphi 0, %s155
    %s170 = sphi 0, %s156
    %s174 = sphi 0, %s174
    %s176 = sphi 0, %s174
    %s177 = sphi 0, %s176
    %s191 = sphi 0, %s177
    %s197 = sphi 0, %s199
    %s200 = sphi 0, %s197
    %s201 = sphi 0, %s200
    %s217 = sphi 0, %s201
  $region4: #{conv_sequence_forward.1} parent=0 // loop_header_branch
    %17 = sbr.rel (%p15) target = $region8
  $region5: #{conv_sequence_forward.1} parent=0 // loop_body
    %s19 = ssub.s32 %s14, 1
    %s20 = ssub.s32 %s14, 2
    %s21 = sadd.s32 %s14, 1
    %s22 = ssub.s32 %s14, %s21
    %p23 = scmp.eq.s32.totalorder %s22, 0
    %s25 = sadd.s32 %s24, 1
    %s26 = scalar_select %p23, %s24, %s25
    %p29 = pneg %p23
    %p30 = scmp.eq.s32.totalorder %s14, 1
    %p31 = por %p29, %p30
    %p32 = scmp.ne.s32.totalorder %s24, %s27
    %p33 = scmp.eq.s32.totalorder %s14, 0
    %p34 = por %p32, %p33
    %p35 = scmp.ne.s32.totalorder %s24, %s27
    %p36 = scmp.eq.s32.totalorder %s19, 1
    %p37 = por %p35, %p36
    %p38 = scmp.ne.s32.totalorder %s27, %s28
    %p39 = scmp.eq.s32.totalorder %s19, 0
    %p40 = por %p38, %p39
    %p41 = scmp.ne.s32.totalorder %s27, %s28
    %p42 = scmp.eq.s32.totalorder %s20, 1
    %p43 = por %p41, %p42
    %p45 = scmp.ne.s32.totalorder %s28, %s44
    %p46 = scmp.eq.s32.totalorder %s20, 0
    %p47 = por %p45, %p46
    %s49 = sadd.s32 %s48, 1
    %p52 = scmp.eq.s32.totalorder %s14, 1
    %p53 = scmp.ne.s32.totalorder %s48, %s50
    %p54 = scmp.eq.s32.totalorder %s14, 0
    %p55 = por %p53, %p54
    %p56 = scmp.ne.s32.totalorder %s48, %s50
    %p57 = scmp.eq.s32.totalorder %s19, 1
    %p58 = por %p56, %p57
    %p59 = scmp.ne.s32.totalorder %s50, %s51
    %p60 = scmp.eq.s32.totalorder %s19, 0
    %p61 = por %p59, %p60
    %p62 = scmp.ne.s32.totalorder %s50, %s51
    %p63 = scmp.eq.s32.totalorder %s20, 1
    %p64 = por %p62, %p63
    %p66 = scmp.ne.s32.totalorder %s51, %s65
    %p67 = scmp.eq.s32.totalorder %s20, 0
    %p68 = por %p66, %p67
    %s70 = sadd.s32 %s69, 1
    %p73 = scmp.eq.s32.totalorder %s14, 1
    %p74 = scmp.ne.s32.totalorder %s69, %s71
    %p75 = scmp.eq.s32.totalorder %s14, 0
    %p76 = por %p74, %p75
    %p77 = scmp.ne.s32.totalorder %s69, %s71
    %p78 = scmp.eq.s32.totalorder %s19, 1
    %p79 = por %p77, %p78
    %p80 = scmp.ne.s32.totalorder %s71, %s72
    %p81 = scmp.eq.s32.totalorder %s19, 0
    %p82 = por %p80, %p81
    %p83 = scmp.ne.s32.totalorder %s71, %s72
    %p84 = scmp.eq.s32.totalorder %s20, 1
    %p85 = por %p83, %p84
    %p87 = scmp.ne.s32.totalorder %s72, %s86
    %p88 = scmp.eq.s32.totalorder %s20, 0
    %p89 = por %p87, %p88
    %s91 = sadd.s32 %s90, 1
    %p94 = scmp.eq.s32.totalorder %s14, 1
    %p95 = scmp.ne.s32.totalorder %s90, %s92
    %p96 = scmp.eq.s32.totalorder %s14, 0
    %p97 = por %p95, %p96
    %p98 = scmp.ne.s32.totalorder %s90, %s92
    %p99 = scmp.eq.s32.totalorder %s19, 1
    %p100 = por %p98, %p99
    %p101 = scmp.ne.s32.totalorder %s92, %s93
    %p102 = scmp.eq.s32.totalorder %s19, 0
    %p103 = por %p101, %p102
    %p104 = scmp.ne.s32.totalorder %s92, %s93
    %p105 = scmp.eq.s32.totalorder %s20, 1
    %p106 = por %p104, %p105
    %p108 = scmp.ne.s32.totalorder %s93, %s107
    %p109 = scmp.eq.s32.totalorder %s20, 0
    %p110 = por %p108, %p109
    %s112 = sadd.s32 %s111, 1
    %p115 = scmp.eq.s32.totalorder %s14, 1
    %p116 = scmp.ne.s32.totalorder %s111, %s113
    %p117 = scmp.eq.s32.totalorder %s14, 0
    %p118 = por %p116, %p117
    %p119 = scmp.ne.s32.totalorder %s111, %s113
    %p120 = scmp.eq.s32.totalorder %s19, 1
    %p121 = por %p119, %p120
    %p122 = scmp.ne.s32.totalorder %s113, %s114
    %p123 = scmp.eq.s32.totalorder %s19, 0
    %p124 = por %p122, %p123
    %p125 = scmp.ne.s32.totalorder %s113, %s114
    %p126 = scmp.eq.s32.totalorder %s20, 1
    %p127 = por %p125, %p126
    %p129 = scmp.ne.s32.totalorder %s114, %s128
    %p130 = scmp.eq.s32.totalorder %s20, 0
    %p131 = por %p129, %p130
    %s133 = sadd.s32 %s132, 1
    %p136 = scmp.eq.s32.totalorder %s14, 1
    %p137 = scmp.ne.s32.totalorder %s132, %s134
    %p138 = scmp.eq.s32.totalorder %s14, 0
    %p139 = por %p137, %p138
    %p140 = scmp.ne.s32.totalorder %s132, %s134
    %p141 = scmp.eq.s32.totalorder %s19, 1
    %p142 = por %p140, %p141
    %p143 = scmp.ne.s32.totalorder %s134, %s135
    %p144 = scmp.eq.s32.totalorder %s19, 0
    %p145 = por %p143, %p144
    %p146 = scmp.ne.s32.totalorder %s134, %s135
    %p147 = scmp.eq.s32.totalorder %s20, 1
    %p148 = por %p146, %p147
    %p150 = scmp.ne.s32.totalorder %s135, %s149
    %p151 = scmp.eq.s32.totalorder %s20, 0
    %p152 = por %p150, %p151
    %s154 = sadd.s32 %s153, 1
    %p157 = scmp.eq.s32.totalorder %s14, 1
    %p158 = scmp.ne.s32.totalorder %s153, %s155
    %p159 = scmp.eq.s32.totalorder %s14, 0
    %p160 = por %p158, %p159
    %p161 = scmp.ne.s32.totalorder %s153, %s155
    %p162 = scmp.eq.s32.totalorder %s19, 1
    %p163 = por %p161, %p162
    %p164 = scmp.ne.s32.totalorder %s155, %s156
    %p165 = scmp.eq.s32.totalorder %s19, 0
    %p166 = por %p164, %p165
    %p167 = scmp.ne.s32.totalorder %s155, %s156
    %p168 = scmp.eq.s32.totalorder %s20, 1
    %p169 = por %p167, %p168
    %p171 = scmp.ne.s32.totalorder %s156, %s170
    %p172 = scmp.eq.s32.totalorder %s20, 0
    %p173 = por %p171, %p172
    %s175 = sadd.s32 %s174, 1
    %p178 = scmp.eq.s32.totalorder %s14, 1
    %p179 = scmp.ne.s32.totalorder %s174, %s176
    %p180 = scmp.eq.s32.totalorder %s14, 0
    %p181 = por %p179, %p180
    %p182 = scmp.ne.s32.totalorder %s174, %s176
    %p183 = scmp.eq.s32.totalorder %s19, 1
    %p184 = por %p182, %p183
    %p185 = scmp.ne.s32.totalorder %s176, %s177
    %p186 = scmp.eq.s32.totalorder %s19, 0
    %p187 = por %p185, %p186
    %p188 = scmp.ne.s32.totalorder %s176, %s177
    %p189 = scmp.eq.s32.totalorder %s20, 1
    %p190 = por %p188, %p189
    %p192 = scmp.ne.s32.totalorder %s177, %s191
    %p193 = scmp.eq.s32.totalorder %s20, 0
    %p194 = por %p192, %p193
    %s195 = ssub.s32 %s14, %s21
    %p196 = scmp.eq.s32.totalorder %s195, 0
    %s198 = sadd.s32 %s197, 1
    %s199 = scalar_select %p196, %s197, %s198
    %p202 = pneg %p196
    %p203 = scmp.eq.s32.totalorder %s14, 1
    %p204 = por %p202, %p203
    %p205 = scmp.ne.s32.totalorder %s197, %s200
    %p206 = scmp.eq.s32.totalorder %s14, 0
    %p207 = por %p205, %p206
    %p208 = scmp.ne.s32.totalorder %s197, %s200
    %p209 = scmp.eq.s32.totalorder %s19, 1
    %p210 = por %p208, %p209
    %p211 = scmp.ne.s32.totalorder %s200, %s201
    %p212 = scmp.eq.s32.totalorder %s19, 0
    %p213 = por %p211, %p212
    %p214 = scmp.ne.s32.totalorder %s200, %s201
    %p215 = scmp.eq.s32.totalorder %s20, 1
    %p216 = por %p214, %p215
    %p218 = scmp.ne.s32.totalorder %s201, %s217
    %p219 = scmp.eq.s32.totalorder %s20, 0
    %p220 = por %p218, %p219
    %p221 = scmp.le.s32.totalorder 1, %s14
    %p222 = scmp.lt.s32.totalorder %s14, 3
    %p223 = pnand %p221, %p222
    %p224 = pneg %p223
    // Predicated region
    $region9: #{conv_sequence_forward.1} parent=5 // pred_check
      _
    $region10: #{conv_sequence_forward.1} parent=5 // pred_check_branch
      %226 = sbr.rel (%p223) target = $region12
    $region11: #{conv_sequence_forward.1} parent=5 // pred_region
      %s227 = ssub.s32 %s14, 1
      // Predicated region
      $region13: #{conv_sequence_forward.1} parent=11 // pred_check
        %p228 = pneg %p61
      $region14: #{conv_sequence_forward.1} parent=11 // pred_check_branch
        %230 = sbr.rel (%p228) target = $region16
      $region15: #{conv_sequence_forward.1} parent=11 // pred_region
        _
      $region16: #{conv_sequence_forward.1} parent=11 // pred_fallthru
        _
      // Predicated region
      $region17: #{conv_sequence_forward.1} parent=11 // pred_check
        %p231 = pneg %p82
      $region18: #{conv_sequence_forward.1} parent=11 // pred_check_branch
        %233 = sbr.rel (%p231) target = $region20
      $region19: #{conv_sequence_forward.1} parent=11 // pred_region
        _
      $region20: #{conv_sequence_forward.1} parent=11 // pred_fallthru
        _
      // Predicated region
      $region21: #{conv_sequence_forward.1} parent=11 // pred_check
        %p234 = pneg %p103
      $region22: #{conv_sequence_forward.1} parent=11 // pred_check_branch
        %236 = sbr.rel (%p234) target = $region24
      $region23: #{conv_sequence_forward.1} parent=11 // pred_region
        _
      $region24: #{conv_sequence_forward.1} parent=11 // pred_fallthru
        _
      // Predicated region
      $region25: #{conv_sequence_forward.1} parent=11 // pred_check
        %p237 = pneg %p124
      $region26: #{conv_sequence_forward.1} parent=11 // pred_check_branch
        %239 = sbr.rel (%p237) target = $region28
      $region27: #{conv_sequence_forward.1} parent=11 // pred_region
        _
      $region28: #{conv_sequence_forward.1} parent=11 // pred_fallthru
        _
      // Predicated region
      $region29: #{conv_sequence_forward.1} parent=11 // pred_check
        %p240 = pneg %p145
      $region30: #{conv_sequence_forward.1} parent=11 // pred_check_branch
        %242 = sbr.rel (%p240) target = $region32
      $region31: #{conv_sequence_forward.1} parent=11 // pred_region
        _
      $region32: #{conv_sequence_forward.1} parent=11 // pred_fallthru
        _
      // Predicated region
      $region33: #{conv_sequence_forward.1} parent=11 // pred_check
        %p243 = pneg %p166
      $region34: #{conv_sequence_forward.1} parent=11 // pred_check_branch
        %245 = sbr.rel (%p243) target = $region36
      $region35: #{conv_sequence_forward.1} parent=11 // pred_region
        _
      $region36: #{conv_sequence_forward.1} parent=11 // pred_fallthru
        _
      // Predicated region
      $region37: #{conv_sequence_forward.1} parent=11 // pred_check
        %p246 = pneg %p187
      $region38: #{conv_sequence_forward.1} parent=11 // pred_check_branch
        %248 = sbr.rel (%p246) target = $region40
      $region39: #{conv_sequence_forward.1} parent=11 // pred_region
        _
      $region40: #{conv_sequence_forward.1} parent=11 // pred_fallthru
        _
    $region12: #{conv_sequence_forward.1} parent=5 // pred_fallthru
      _
    %p249 = scmp.lt.s32.totalorder %s14, 2
    // Predicated region
    $region41: #{conv_sequence_forward.1} parent=5 // pred_check
      %p250 = pneg %p249
    $region42: #{conv_sequence_forward.1} parent=5 // pred_check_branch
      %252 = sbr.rel (%p250) target = $region44
    $region43: #{conv_sequence_forward.1} parent=5 // pred_region
      // Predicated region
      $region45: #{conv_sequence_forward.1} parent=43 // pred_check
        %p253 = pneg %p34
      $region46: #{conv_sequence_forward.1} parent=43 // pred_check_branch
        %255 = sbr.rel (%p253) target = $region48
      $region47: #{conv_sequence_forward.1} parent=43 // pred_region
        %s256 = smul.u32 2, %s14
        %p257 = scmp.lt.s32.totalorder %s256, 3
        %s258 = scalar_select %p257, %s256, 3
        %s259 = smul.addr %s258, 4
        %s260 = scalar_lea.vmem %s0, %s259
        %s261 = smul.u32 2, %s14
      $region48: #{conv_sequence_forward.1} parent=43 // pred_fallthru
        _
    $region44: #{conv_sequence_forward.1} parent=5 // pred_fallthru
      _
    %p262 = scmp.le.s32.totalorder 1, %s14
    %p263 = scmp.lt.s32.totalorder %s14, 3
    %p264 = pnand %p262, %p263
    %p265 = pneg %p264
    // Predicated region
    $region49: #{conv_sequence_forward.1} parent=5 // pred_check
      _
    $region50: #{conv_sequence_forward.1} parent=5 // pred_check_branch
      %267 = sbr.rel (%p264) target = $region52
    $region51: #{conv_sequence_forward.1} parent=5 // pred_region
      %s268 = ssub.s32 %s14, 1
      %s269 = smul.u32 2, %s19
      %p270 = scmp.lt.s32.totalorder %s269, 3
      %s271 = scalar_select %p270, %s269, 3
      %s272 = smul.addr %s271, 4
      %s273 = scalar_lea.vmem %s0, %s272
      %p274 = pneg %p40
      %p275 = pneg %p37
      %p276 = pneg %p61
      %p277 = pneg %p58
      %p278 = pneg %p82
      %p279 = pneg %p79
      %p280 = pneg %p103
      %p281 = pneg %p100
      %p282 = pneg %p124
      %p283 = pneg %p121
      %p284 = pneg %p145
      %p285 = pneg %p142
      %p286 = pneg %p166
      %p287 = pneg %p163
      %p288 = pneg %p187
      %p289 = pneg %p184
      %p290 = pneg %p213
      %p291 = pneg %p210
      %p292 = scmp.lt.s32.totalorder %s19, 1
      %s293 = scalar_select %p292, %s19, 1
      %s294 = smul.addr %s293, 8
      %s295 = scalar_lea.vmem %s8, %s294
      %s296 = smul.u32 2, %s19
      %p297 = scmp.lt.s32.totalorder %s296, 3
      %s298 = scalar_select %p297, %s296, 3
      %s299 = smul.addr %s298, 4
      %s300 = scalar_lea.vmem %s0, %s299
      %s301 = smul.u32 2, %s19
      %p302 = scmp.lt.s32.totalorder %s19, 1
      %s303 = scalar_select %p302, %s19, 1
      %s304 = smul.addr %s303, 8
      %s305 = scalar_lea.vmem %s8, %s304
      %v306 = vld [vmem:[%s1] ss:$2 sm:$0x3]
      %s307 = scalar_lea.vmem %s1, 1
      %v308 = vld [vmem:[%s307] ss:$2 sm:$0x3]
      %v309 = vadd.s32 %v306, 4294967295
      %vm310 = vcmp.ge.s32.totalorder %v309, 0
      %vm311 = vcmp.le.s32.totalorder %v309, 15
      %vm312 = vmand %vm310, %vm311
      %vm313 = vcmp.ge.s32.totalorder %v306, 0
      %vm314 = vcmp.le.s32.totalorder %v306, 15
      %vm315 = vmand %vm313, %vm314
      %v316 = vadd.s32 %v306, 1
      %vm317 = vcmp.ge.s32.totalorder %v316, 0
      %vm318 = vcmp.le.s32.totalorder %v316, 15
      %vm319 = vmand %vm317, %vm318
      %v320 = vadd.s32 %v308, 4294967295
      %vm321 = vcmp.ge.s32.totalorder %v320, 0
      %vm322 = vcmp.le.s32.totalorder %v320, 15
      %vm323 = vmand %vm321, %vm322
      %vm324 = vcmp.ge.s32.totalorder %v308, 0
      %vm325 = vcmp.le.s32.totalorder %v308, 15
      %vm326 = vmand %vm324, %vm325
      %v327 = vadd.s32 %v308, 1
      %vm328 = vcmp.ge.s32.totalorder %v327, 0
      %vm329 = vcmp.le.s32.totalorder %v327, 15
      %vm330 = vmand %vm328, %vm329
      %v331 = vld [vmem:[%s2] sm:$0x1]
      %v332 = vld [vmem:[%s2 + $0x1] sm:$0x1]
      %v333 = vadd.s32 %v331, 4294967295
      %vm334 = vcmp.ge.s32.totalorder %v333, 0
      %vm335 = vcmp.le.s32.totalorder %v333, 7
      %vm336 = vmand %vm334, %vm335
      %vm337 = vcmp.ge.s32.totalorder %v331, 0
      %vm338 = vcmp.le.s32.totalorder %v331, 7
      %vm339 = vmand %vm337, %vm338
      %v340 = vadd.s32 %v331, 1
      %vm341 = vcmp.ge.s32.totalorder %v340, 0
      %vm342 = vcmp.le.s32.totalorder %v340, 7
      %vm343 = vmand %vm341, %vm342
      %v344 = vadd.s32 %v332, 4294967295
      %vm345 = vcmp.ge.s32.totalorder %v344, 0
      %vm346 = vcmp.le.s32.totalorder %v344, 7
      %vm347 = vmand %vm345, %vm346
      %vm348 = vcmp.ge.s32.totalorder %v332, 0
      %vm349 = vcmp.le.s32.totalorder %v332, 7
      %vm350 = vmand %vm348, %vm349
      %v351 = vadd.s32 %v332, 1
      %vm352 = vcmp.ge.s32.totalorder %v351, 0
      %vm353 = vcmp.le.s32.totalorder %v351, 7
      %vm354 = vmand %vm352, %vm353
      %v355 = vld [vmem:[%s300] sm:$0xff]
      %v356 = vld [vmem:[%s3] sm:$0xff]
      %v357 = vld [vmem:[%s4] sm:$0xff]
      %v359 = vcombine.high %v355, %v355
      %360 = vrot.lane.b32.xlu0 %v359, 17
      %v361 = vpop.permute.xlu0 %360
      %363 = vrot.lane.b32.xlu0 %v355, 17
      %v364 = vpop.permute.xlu0 %363
      %vm365 = vcmask 138240
      %v366 = vsel %vm365, %v364, %v361
      %v369 = vsel %vm365, %v361, %v364
      %vm370 = vmand %vm312, %vm323
      %v371 = vsel %vm370, 1, 0
      %v372 = vlaneseq
      %v373 = vshrl.u32 %v372, 7
      %v374 = vsub.s32 0, %v373
      %v375 = vrot.slane %v371, %v374
      %v376 = vlaneseq
      %v377 = vshrl.u32 %v376, 7
      %v378 = vsub.s32 1, %v377
      %v379 = vrot.slane %v371, %v378
      %vm380 = vcmp.eq.s32.totalorder %v375, 1
      %vm381 = vcmp.eq.s32.totalorder %v379, 1
      %v382 = vsel %vm380, %v369, 0.0
      %v383 = vsel %vm381, %v366, 0.0
      %384 = vrot.lane.b32.xlu0 %v359, 16
      %v385 = vpop.permute.xlu0 %384
      %387 = vrot.lane.b32.xlu0 %v355, 16
      %v388 = vpop.permute.xlu0 %387
      %vm389 = vcmask 130048
      %v390 = vsel %vm389, %v388, %v385
      %v393 = vsel %vm389, %v385, %v388
      %vm394 = vmand %vm312, %vm326
      %v395 = vsel %vm394, 1, 0
      %v396 = vlaneseq
      %v397 = vshrl.u32 %v396, 7
      %v398 = vsub.s32 0, %v397
      %v399 = vrot.slane %v395, %v398
      %v400 = vlaneseq
      %v401 = vshrl.u32 %v400, 7
      %v402 = vsub.s32 1, %v401
      %v403 = vrot.slane %v395, %v402
      %vm404 = vcmp.eq.s32.totalorder %v399, 1
      %vm405 = vcmp.eq.s32.totalorder %v403, 1
      %v406 = vsel %vm404, %v393, 0.0
      %v407 = vsel %vm405, %v390, 0.0
      %408 = vrot.lane.b32.xlu0 %v359, 15
      %v409 = vpop.permute.xlu0 %408
      %411 = vrot.lane.b32.xlu0 %v355, 15
      %v412 = vpop.permute.xlu0 %411
      %vm413 = vcmask 121856
      %v414 = vsel %vm413, %v412, %v409
      %v417 = vsel %vm413, %v409, %v412
      %vm418 = vmand %vm312, %vm330
      %v419 = vsel %vm418, 1, 0
      %v420 = vlaneseq
      %v421 = vshrl.u32 %v420, 7
      %v422 = vsub.s32 0, %v421
      %v423 = vrot.slane %v419, %v422
      %v424 = vlaneseq
      %v425 = vshrl.u32 %v424, 7
      %v426 = vsub.s32 1, %v425
      %v427 = vrot.slane %v419, %v426
      %vm428 = vcmp.eq.s32.totalorder %v423, 1
      %vm429 = vcmp.eq.s32.totalorder %v427, 1
      %v430 = vsel %vm428, %v417, 0.0
      %v431 = vsel %vm429, %v414, 0.0
      %432 = vrot.lane.b32.xlu0 %v359, 1
      %v433 = vpop.permute.xlu0 %432
      %435 = vrot.lane.b32.xlu0 %v355, 1
      %v436 = vpop.permute.xlu0 %435
      %vm437 = vcmask 7168
      %v438 = vsel %vm437, %v436, %v433
      %v441 = vsel %vm437, %v433, %v436
      %vm442 = vmand %vm315, %vm323
      %v443 = vsel %vm442, 1, 0
      %v444 = vlaneseq
      %v445 = vshrl.u32 %v444, 7
      %v446 = vsub.s32 0, %v445
      %v447 = vrot.slane %v443, %v446
      %v448 = vlaneseq
      %v449 = vshrl.u32 %v448, 7
      %v450 = vsub.s32 1, %v449
      %v451 = vrot.slane %v443, %v450
      %vm452 = vcmp.eq.s32.totalorder %v447, 1
      %vm453 = vcmp.eq.s32.totalorder %v451, 1
      %v454 = vsel %vm452, %v441, 0.0
      %v455 = vsel %vm453, %v438, 0.0
      %456 = vrot.lane.b32.xlu0 %v355, 127
      %v457 = vpop.permute.xlu0 %456
      %458 = vrot.lane.b32.xlu0 %v359, 127
      %v459 = vpop.permute.xlu0 %458
      %vm460 = vcmask 1039360
      %v461 = vsel %vm460, %v457, %v459
      %v465 = vsel %vm460, %v459, %v457
      %vm466 = vmand %vm315, %vm330
      %v467 = vsel %vm466, 1, 0
      %v468 = vlaneseq
      %v469 = vshrl.u32 %v468, 7
      %v470 = vsub.s32 0, %v469
      %v471 = vrot.slane %v467, %v470
      %v472 = vlaneseq
      %v473 = vshrl.u32 %v472, 7
      %v474 = vsub.s32 1, %v473
      %v475 = vrot.slane %v467, %v474
      %vm476 = vcmp.eq.s32.totalorder %v471, 1
      %vm477 = vcmp.eq.s32.totalorder %v475, 1
      %v478 = vsel %vm476, %v461, 0.0
      %v479 = vsel %vm477, %v465, 0.0
      %480 = vrot.lane.b32.xlu0 %v355, 113
      %v481 = vpop.permute.xlu0 %480
      %482 = vrot.lane.b32.xlu0 %v359, 113
      %v483 = vpop.permute.xlu0 %482
      %vm484 = vcmask 924672
      %v485 = vsel %vm484, %v481, %v483
      %v489 = vsel %vm484, %v483, %v481
      %vm490 = vmand %vm319, %vm323
      %v491 = vsel %vm490, 1, 0
      %v492 = vlaneseq
      %v493 = vshrl.u32 %v492, 7
      %v494 = vsub.s32 0, %v493
      %v495 = vrot.slane %v491, %v494
      %v496 = vlaneseq
      %v497 = vshrl.u32 %v496, 7
      %v498 = vsub.s32 1, %v497
      %v499 = vrot.slane %v491, %v498
      %vm500 = vcmp.eq.s32.totalorder %v495, 1
      %vm501 = vcmp.eq.s32.totalorder %v499, 1
      %v502 = vsel %vm500, %v485, 0.0
      %v503 = vsel %vm501, %v489, 0.0
      %504 = vrot.lane.b32.xlu0 %v355, 112
      %v505 = vpop.permute.xlu0 %504
      %506 = vrot.lane.b32.xlu0 %v359, 112
      %v507 = vpop.permute.xlu0 %506
      %vm508 = vcmask 916480
      %v509 = vsel %vm508, %v505, %v507
      %v513 = vsel %vm508, %v507, %v505
      %vm514 = vmand %vm319, %vm326
      %v515 = vsel %vm514, 1, 0
      %v516 = vlaneseq
      %v517 = vshrl.u32 %v516, 7
      %v518 = vsub.s32 0, %v517
      %v519 = vrot.slane %v515, %v518
      %v520 = vlaneseq
      %v521 = vshrl.u32 %v520, 7
      %v522 = vsub.s32 1, %v521
      %v523 = vrot.slane %v515, %v522
      %vm524 = vcmp.eq.s32.totalorder %v519, 1
      %vm525 = vcmp.eq.s32.totalorder %v523, 1
      %v526 = vsel %vm524, %v509, 0.0
      %v527 = vsel %vm525, %v513, 0.0
      %528 = vrot.lane.b32.xlu0 %v355, 111
      %v529 = vpop.permute.xlu0 %528
      %530 = vrot.lane.b32.xlu0 %v359, 111
      %v531 = vpop.permute.xlu0 %530
      %vm532 = vcmask 908288
      %v533 = vsel %vm532, %v529, %v531
      %v537 = vsel %vm532, %v531, %v529
      %vm538 = vmand %vm319, %vm330
      %v539 = vsel %vm538, 1, 0
      %v540 = vlaneseq
      %v541 = vshrl.u32 %v540, 7
      %v542 = vsub.s32 0, %v541
      %v543 = vrot.slane %v539, %v542
      %v544 = vlaneseq
      %v545 = vshrl.u32 %v544, 7
      %v546 = vsub.s32 1, %v545
      %v547 = vrot.slane %v539, %v546
      %vm548 = vcmp.eq.s32.totalorder %v543, 1
      %vm549 = vcmp.eq.s32.totalorder %v547, 1
      %v550 = vsel %vm548, %v533, 0.0
      %v551 = vsel %vm549, %v537, 0.0
      %v554 = vrot.slane %v406, 4
      %v555 = vrot.slane %v407, 4
      %v560 = vrot.slane %v454, 4
      %v561 = vrot.slane %v455, 4
      %v567 = vrot.slane %v478, 4
      %v568 = vrot.slane %v479, 4
      %v573 = vrot.slane %v526, 4
      %v574 = vrot.slane %v527, 4
      %vm577 = vcmask 1043456
      %v578 = vsel %vm577, %v382, %v554
      %v579 = vsel %vm577, %v383, %v555
      %v580 = vsel %vm577, %v430, %v560
      %v581 = vsel %vm577, %v431, %v561
      %v582 = vsel %vm577, %v355, %v567
      %v583 = vsel %vm577, %v359, %v568
      %v584 = vsel %vm577, %v502, %v573
      %v585 = vsel %vm577, %v503, %v574
      %587 = vset.pattern.permute.xlu0 0
      %588 = vperm.xlu0 %587, %v357
      %v589 = vpop.permute.xlu0 %588
      %vm591 = vcmask 293888
      %v593 = vsel %vm591, %v356, 0
      %v596 = vsel %vm577, %v550, 0
      %v599 = vsel %vm577, %v551, 0
      %601 = vmatprep.subr.mxu0 %v579
      %602 = vmatpush1.msra.mxu0 %v578
      %603 = vmatprep.subr.mxu0 %v581
      %604 = vmatpush1.msra.mxu0 %v580
      %605 = vmatprep.subr.mxu0 %v583
      %606 = vmatpush1.msra.mxu0 %v582
      %607 = vmatprep.subr.mxu0 %v585
      %608 = vmatpush1.msra.mxu0 %v584
      %609 = vmatprep.subr.mxu0 %v599
      %610 = vmatpush1.msra.mxu0 %v596
      %611 = vmatprep.subr.mxu0 0.0
      %612 = vmatpush1.msra.mxu0 0.0
      %613 = vmatprep.subr.mxu0 0.0
      %614 = vmatpush1.msra.mxu0 0.0
      %615 = vmatprep.subr.mxu0 0.0
      %616 = vmatpush1.msra.mxu0 0.0
      %617 = vmatprep.subr.mxu0 0.0
      %618 = vmatpush1.msra.mxu0 0.0
      %619 = vmatprep.subr.mxu0 0.0
      %620 = vmatpush1.msra.mxu0 0.0
      %621 = vmatprep.subr.mxu0 0.0
      %622 = vmatpush1.msra.mxu0 0.0
      %623 = vmatprep.subr.mxu0 0.0
      %624 = vmatpush1.msra.mxu0 0.0
      %625 = vmatprep.subr.mxu0 0.0
      %626 = vmatpush1.msra.mxu0 0.0
      %627 = vmatprep.subr.mxu0 0.0
      %628 = vmatpush1.msra.mxu0 0.0
      %629 = vmatprep.subr.mxu0 0.0
      %630 = vmatpush1.msra.mxu0 0.0
      %631 = vmatprep.subr.mxu0 0.0
      %632 = vmatpush1.msra.mxu0 0.0
      %633 = vmatprep.subr.mxu0 0.0
      %634 = vmatpush1.msra.mxu0 0.0
      %635 = vmatprep.subr.mxu0 0.0
      %636 = vmatpush1.msra.mxu0 0.0
      %637 = vmatprep.subr.mxu0 0.0
      %638 = vmatpush1.msra.mxu0 0.0
      %639 = vmatprep.subr.mxu0 0.0
      %640 = vmatpush1.msra.mxu0 0.0
      %641 = vmatprep.subr.mxu0 0.0
      %642 = vmatpush1.msra.mxu0 0.0
      %643 = vmatprep.subr.mxu0 0.0
      %644 = vmatpush1.msra.mxu0 0.0
      %645 = vmatprep.subr.mxu0 0.0
      %646 = vmatpush1.msra.mxu0 0.0
      %647 = vmatprep.subr.mxu0 0.0
      %648 = vmatpush1.msra.mxu0 0.0
      %649 = vmatprep.subr.mxu0 0.0
      %650 = vmatpush1.msra.mxu0 0.0
      %651 = vmatprep.subr.mxu0 0.0
      %652 = vmatpush1.msra.mxu0 0.0
      %653 = vmatprep.subr.mxu0 0.0
      %654 = vmatpush1.msra.mxu0 0.0
      %655 = vmatprep.subr.mxu0 0.0
      %656 = vmatpush1.msra.mxu0 0.0
      %657 = vmatprep.subr.mxu0 0.0
      %658 = vmatpush1.msra.mxu0 0.0
      %659 = vmatprep.subr.mxu0 0.0
      %660 = vmatpush1.msra.mxu0 0.0
      %661 = vmatprep.subr.mxu0 0.0
      %662 = vmatpush1.msra.mxu0 0.0
      %663 = vmatprep.subr.mxu0 0.0
      %664 = vmatpush1.msra.mxu0 0.0
      %665 = vmatprep.mubr.f32.mxu0 0.0
      %666 = vmatmul.mubr.f32.gmra.mrb[0].mxu0 %v593
      %v667 = vpop.f32.mrb[0].mxu0
      %v668 = vadd.f32 %v589, %v667
      %v669 = vpop.f32.mrb[0].mxu0
      %v670 = vadd.f32 %v589, %v669
      %671 = vdwg.mxu0
      %v672 = vld [vmem:[%s7] sm:$0xff]
      %v673 = vld [vmem:[%s7 + $0x8] sm:$0xff]
      %v674 = vld [vmem:[%s7 + $0x10] sm:$0xff]
      %v675 = vld [vmem:[%s7 + $0x18] sm:$0xff]
      %v676 = vld [vmem:[%s7 + $0x20] sm:$0xff]
      %v677 = vld [vmem:[%s7 + $0x28] sm:$0xff]
      %v678 = vld [vmem:[%s7 + $0x30] sm:$0xff]
      %v679 = vld [vmem:[%s7 + $0x38] sm:$0xff]
      %v680 = vld [vmem:[%s7 + $0x40] sm:$0xff]
      %v681 = vld [vmem:[%s7 + $0x48] sm:$0xff]
      %v682 = vld [vmem:[%s7 + $0x50] sm:$0xff]
      %v683 = vld [vmem:[%s7 + $0x58] sm:$0xff]
      %v684 = vld [vmem:[%s7 + $0x60] sm:$0xff]
      %v685 = vld [vmem:[%s7 + $0x68] sm:$0xff]
      %v686 = vld [vmem:[%s7 + $0x70] sm:$0xff]
      %v687 = vld [vmem:[%s7 + $0x78] sm:$0xff]
      %v688 = vld [vmem:[%s7 + $0x80] sm:$0xff]
      %v689 = vld [vmem:[%s7 + $0x88] sm:$0xff]
      %v690 = vld [vmem:[%s7 + $0x90] sm:$0xff]
      %v691 = vld [vmem:[%s7 + $0x98] sm:$0xff]
      %v692 = vld [vmem:[%s7 + $0xa0] sm:$0xff]
      %v693 = vld [vmem:[%s7 + $0xa8] sm:$0xff]
      %v694 = vld [vmem:[%s7 + $0xb0] sm:$0xff]
      %v695 = vld [vmem:[%s7 + $0xb8] sm:$0xff]
      %v696 = vld [vmem:[%s7 + $0xc0] sm:$0xff]
      %v697 = vld [vmem:[%s7 + $0xc8] sm:$0xff]
      %v698 = vld [vmem:[%s7 + $0xd0] sm:$0xff]
      %v699 = vld [vmem:[%s7 + $0xd8] sm:$0xff]
      %v700 = vld [vmem:[%s7 + $0xe0] sm:$0xff]
      %v701 = vld [vmem:[%s7 + $0xe8] sm:$0xff]
      %v702 = vld [vmem:[%s7 + $0xf0] sm:$0xff]
      %v703 = vld [vmem:[%s7 + $0xf8] sm:$0xff]
      %705 = vrot.lane.b32.xlu0 %v670, 16
      %v706 = vpop.permute.xlu0 %705
      %709 = vrot.lane.b32.xlu0 %v668, 16
      %v710 = vpop.permute.xlu0 %709
      %v711 = vsel %vm389, %v710, %v706
      %v714 = vsel %vm389, %v706, %v710
      %v715 = vsel %vm312, 1, 0
      %v716 = vlaneseq
      %v717 = vshrl.u32 %v716, 7
      %v718 = vsub.s32 0, %v717
      %v719 = vrot.slane %v715, %v718
      %v720 = vlaneseq
      %v721 = vshrl.u32 %v720, 7
      %v722 = vsub.s32 1, %v721
      %v723 = vrot.slane %v715, %v722
      %vm724 = vcmp.eq.s32.totalorder %v719, 1
      %vm725 = vcmp.eq.s32.totalorder %v723, 1
      %v726 = vsel %vm724, %v714, -inf
      %v727 = vsel %vm725, %v711, -inf
      %v728 = vmax.f32 %v668, %v726
      %v729 = vmax.f32 %v670, %v727
      %730 = vrot.lane.b32.xlu0 %v668, 112
      %v731 = vpop.permute.xlu0 %730
      %732 = vrot.lane.b32.xlu0 %v670, 112
      %v733 = vpop.permute.xlu0 %732
      %v734 = vsel %vm508, %v731, %v733
      %v738 = vsel %vm508, %v733, %v731
      %v739 = vsel %vm319, 1, 0
      %v740 = vlaneseq
      %v741 = vshrl.u32 %v740, 7
      %v742 = vsub.s32 0, %v741
      %v743 = vrot.slane %v739, %v742
      %v744 = vlaneseq
      %v745 = vshrl.u32 %v744, 7
      %v746 = vsub.s32 1, %v745
      %v747 = vrot.slane %v739, %v746
      %vm748 = vcmp.eq.s32.totalorder %v743, 1
      %vm749 = vcmp.eq.s32.totalorder %v747, 1
      %v750 = vsel %vm748, %v734, -inf
      %v751 = vsel %vm749, %v738, -inf
      %v752 = vmax.f32 %v728, %v750
      %v753 = vmax.f32 %v729, %v751
      %755 = vrot.lane.b32.xlu0 %v753, 1
      %v756 = vpop.permute.xlu0 %755
      %759 = vrot.lane.b32.xlu0 %v752, 1
      %v760 = vpop.permute.xlu0 %759
      %v761 = vsel %vm437, %v760, %v756
      %v764 = vsel %vm437, %v756, %v760
      %v765 = vsel %vm323, 1, 0
      %v766 = vlaneseq
      %v767 = vshrl.u32 %v766, 7
      %v768 = vsub.s32 0, %v767
      %v769 = vrot.slane %v765, %v768
      %v770 = vlaneseq
      %v771 = vshrl.u32 %v770, 7
      %v772 = vsub.s32 1, %v771
      %v773 = vrot.slane %v765, %v772
      %vm774 = vcmp.eq.s32.totalorder %v769, 1
      %vm775 = vcmp.eq.s32.totalorder %v773, 1
      %v776 = vsel %vm774, %v764, -inf
      %v777 = vsel %vm775, %v761, -inf
      %v778 = vmax.f32 %v752, %v776
      %v779 = vmax.f32 %v753, %v777
      %780 = vrot.lane.b32.xlu0 %v752, 127
      %v781 = vpop.permute.xlu0 %780
      %782 = vrot.lane.b32.xlu0 %v753, 127
      %v783 = vpop.permute.xlu0 %782
      %v784 = vsel %vm460, %v781, %v783
      %v788 = vsel %vm460, %v783, %v781
      %v789 = vsel %vm330, 1, 0
      %v790 = vlaneseq
      %v791 = vshrl.u32 %v790, 7
      %v792 = vsub.s32 0, %v791
      %v793 = vrot.slane %v789, %v792
      %v794 = vlaneseq
      %v795 = vshrl.u32 %v794, 7
      %v796 = vsub.s32 1, %v795
      %v797 = vrot.slane %v789, %v796
      %vm798 = vcmp.eq.s32.totalorder %v793, 1
      %vm799 = vcmp.eq.s32.totalorder %v797, 1
      %v800 = vsel %vm798, %v784, -inf
      %v801 = vsel %vm799, %v788, -inf
      %v802 = vmax.f32 %v778, %v800
      %v803 = vmax.f32 %v779, %v801
      %804 = vmatprep.subr.mxu0 0.0
      %805 = vmatpush1.msra.mxu0 %v672
      %806 = vmatprep.subr.mxu0 0.0
      %807 = vmatpush1.msra.mxu0 %v673
      %808 = vmatprep.subr.mxu0 0.0
      %809 = vmatpush1.msra.mxu0 %v674
      %810 = vmatprep.subr.mxu0 0.0
      %811 = vmatpush1.msra.mxu0 %v675
      %812 = vmatprep.subr.mxu0 0.0
      %813 = vmatpush1.msra.mxu0 %v676
      %814 = vmatprep.subr.mxu0 0.0
      %815 = vmatpush1.msra.mxu0 %v677
      %816 = vmatprep.subr.mxu0 0.0
      %817 = vmatpush1.msra.mxu0 %v678
      %818 = vmatprep.subr.mxu0 0.0
      %819 = vmatpush1.msra.mxu0 %v679
      %820 = vmatprep.subr.mxu0 0.0
      %821 = vmatpush1.msra.mxu0 %v680
      %822 = vmatprep.subr.mxu0 0.0
      %823 = vmatpush1.msra.mxu0 %v681
      %824 = vmatprep.subr.mxu0 0.0
      %825 = vmatpush1.msra.mxu0 %v682
      %826 = vmatprep.subr.mxu0 0.0
      %827 = vmatpush1.msra.mxu0 %v683
      %828 = vmatprep.subr.mxu0 0.0
      %829 = vmatpush1.msra.mxu0 %v684
      %830 = vmatprep.subr.mxu0 0.0
      %831 = vmatpush1.msra.mxu0 %v685
      %832 = vmatprep.subr.mxu0 0.0
      %833 = vmatpush1.msra.mxu0 %v686
      %834 = vmatprep.subr.mxu0 0.0
      %835 = vmatpush1.msra.mxu0 %v687
      %836 = vmatprep.subr.mxu0 0.0
      %837 = vmatpush1.msra.mxu0 %v688
      %838 = vmatprep.subr.mxu0 0.0
      %839 = vmatpush1.msra.mxu0 %v689
      %840 = vmatprep.subr.mxu0 0.0
      %841 = vmatpush1.msra.mxu0 %v690
      %842 = vmatprep.subr.mxu0 0.0
      %843 = vmatpush1.msra.mxu0 %v691
      %844 = vmatprep.subr.mxu0 0.0
      %845 = vmatpush1.msra.mxu0 %v692
      %846 = vmatprep.subr.mxu0 0.0
      %847 = vmatpush1.msra.mxu0 %v693
      %848 = vmatprep.subr.mxu0 0.0
      %849 = vmatpush1.msra.mxu0 %v694
      %850 = vmatprep.subr.mxu0 0.0
      %851 = vmatpush1.msra.mxu0 %v695
      %852 = vmatprep.subr.mxu0 0.0
      %853 = vmatpush1.msra.mxu0 %v696
      %854 = vmatprep.subr.mxu0 0.0
      %855 = vmatpush1.msra.mxu0 %v697
      %856 = vmatprep.subr.mxu0 0.0
      %857 = vmatpush1.msra.mxu0 %v698
      %858 = vmatprep.subr.mxu0 0.0
      %859 = vmatpush1.msra.mxu0 %v699
      %860 = vmatprep.subr.mxu0 0.0
      %861 = vmatpush1.msra.mxu0 %v700
      %862 = vmatprep.subr.mxu0 0.0
      %863 = vmatpush1.msra.mxu0 %v701
      %864 = vmatprep.subr.mxu0 0.0
      %865 = vmatpush1.msra.mxu0 %v702
      %866 = vmatprep.subr.mxu0 0.0
      %867 = vmatpush1.msra.mxu0 %v703
      %868 = vmatprep.mubr.f32.mxu0 %v803
      %869 = vmatmul.mubr.f32.gmra.mrb[0].mxu0 %v802
      %v870 = vpop.f32.mrb[0].mxu0
      %v871 = vadd.f32 0.0, %v870
      %v872 = vpop.f32.mrb[0].mxu0
      %873 = vdwg.mxu0
      %v874 = vmax.f32 %v871, 0.0
      %v875 = vld [vmem:[%s5] sm:$0xff]
      %v876 = vld [vmem:[%s6] sm:$0xff]
      %878 = vrot.lane.b32.xlu0 %v874, 73
      %v879 = vpop.permute.xlu0 %878
      %881 = vrot.lane.b32.xlu0 %v874, 9
      %v882 = vpop.permute.xlu0 %881
      %vm884 = vcmask 72704
      %v885 = vsel %vm884, %v879, %v882
      %vm886 = vmand %vm336, %vm347
      %v887 = vsel %vm886, 1, 0
      %v888 = vlaneseq
      %v889 = vshrl.u32 %v888, 7
      %v890 = vsub.s32 0, %v889
      %v891 = vrot.slane %v887, %v890
      %vm892 = vcmp.eq.s32.totalorder %v891, 1
      %v893 = vsel %vm892, %v885, 0.0
      %894 = vrot.lane.b32.xlu0 %v874, 72
      %v895 = vpop.permute.xlu0 %894
      %897 = vrot.lane.b32.xlu0 %v874, 8
      %v898 = vpop.permute.xlu0 %897
      %vm900 = vcmask 64512
      %v901 = vsel %vm900, %v895, %v898
      %vm902 = vmand %vm336, %vm350
      %v903 = vsel %vm902, 1, 0
      %v904 = vlaneseq
      %v905 = vshrl.u32 %v904, 7
      %v906 = vsub.s32 0, %v905
      %v907 = vrot.slane %v903, %v906
      %vm908 = vcmp.eq.s32.totalorder %v907, 1
      %v909 = vsel %vm908, %v901, 0.0
      %910 = vrot.lane.b32.xlu0 %v874, 71
      %v911 = vpop.permute.xlu0 %910
      %913 = vrot.lane.b32.xlu0 %v874, 7
      %v914 = vpop.permute.xlu0 %913
      %vm916 = vcmask 56320
      %v917 = vsel %vm916, %v911, %v914
      %vm918 = vmand %vm336, %vm354
      %v919 = vsel %vm918, 1, 0
      %v920 = vlaneseq
      %v921 = vshrl.u32 %v920, 7
      %v922 = vsub.s32 0, %v921
      %v923 = vrot.slane %v919, %v922
      %vm924 = vcmp.eq.s32.totalorder %v923, 1
      %v925 = vsel %vm924, %v917, 0.0
      %926 = vrot.lane.b32.xlu0 %v874, 65
      %v927 = vpop.permute.xlu0 %926
      %929 = vrot.lane.b32.xlu0 %v874, 1
      %v930 = vpop.permute.xlu0 %929
      %v932 = vsel %vm437, %v927, %v930
      %vm933 = vmand %vm339, %vm347
      %v934 = vsel %vm933, 1, 0
      %v935 = vlaneseq
      %v936 = vshrl.u32 %v935, 7
      %v937 = vsub.s32 0, %v936
      %v938 = vrot.slane %v934, %v937
      %vm939 = vcmp.eq.s32.totalorder %v938, 1
      %v940 = vsel %vm939, %v932, 0.0
      %941 = vrot.lane.b32.xlu0 %v874, 127
      %v942 = vpop.permute.xlu0 %941
      %944 = vrot.lane.b32.xlu0 %v874, 63
      %v945 = vpop.permute.xlu0 %944
      %vm947 = vcmask 515072
      %v948 = vsel %vm947, %v942, %v945
      %vm949 = vmand %vm339, %vm354
      %v950 = vsel %vm949, 1, 0
      %v951 = vlaneseq
      %v952 = vshrl.u32 %v951, 7
      %v953 = vsub.s32 0, %v952
      %v954 = vrot.slane %v950, %v953
      %vm955 = vcmp.eq.s32.totalorder %v954, 1
      %v956 = vsel %vm955, %v948, 0.0
      %957 = vrot.lane.b32.xlu0 %v874, 121
      %v958 = vpop.permute.xlu0 %957
      %960 = vrot.lane.b32.xlu0 %v874, 57
      %v961 = vpop.permute.xlu0 %960
      %vm963 = vcmask 465920
      %v964 = vsel %vm963, %v958, %v961
      %vm965 = vmand %vm343, %vm347
      %v966 = vsel %vm965, 1, 0
      %v967 = vlaneseq
      %v968 = vshrl.u32 %v967, 7
      %v969 = vsub.s32 0, %v968
      %v970 = vrot.slane %v966, %v969
      %vm971 = vcmp.eq.s32.totalorder %v970, 1
      %v972 = vsel %vm971, %v964, 0.0
      %973 = vrot.lane.b32.xlu0 %v874, 120
      %v974 = vpop.permute.xlu0 %973
      %976 = vrot.lane.b32.xlu0 %v874, 56
      %v977 = vpop.permute.xlu0 %976
      %vm979 = vcmask 457728
      %v980 = vsel %vm979, %v974, %v977
      %vm981 = vmand %vm343, %vm350
      %v982 = vsel %vm981, 1, 0
      %v983 = vlaneseq
      %v984 = vshrl.u32 %v983, 7
      %v985 = vsub.s32 0, %v984
      %v986 = vrot.slane %v982, %v985
      %vm987 = vcmp.eq.s32.totalorder %v986, 1
      %v988 = vsel %vm987, %v980, 0.0
      %989 = vrot.lane.b32.xlu0 %v874, 119
      %v990 = vpop.permute.xlu0 %989
      %992 = vrot.lane.b32.xlu0 %v874, 55
      %v993 = vpop.permute.xlu0 %992
      %vm995 = vcmask 449536
      %v996 = vsel %vm995, %v990, %v993
      %vm997 = vmand %vm343, %vm354
      %v998 = vsel %vm997, 1, 0
      %v999 = vlaneseq
      %v1000 = vshrl.u32 %v999, 7
      %v1001 = vsub.s32 0, %v1000
      %v1002 = vrot.slane %v998, %v1001
      %vm1003 = vcmp.eq.s32.totalorder %v1002, 1
      %v1004 = vsel %vm1003, %v996, 0.0
      %1006 = vset.pattern.permute.xlu0 0
      %1007 = vperm.xlu0 %1006, %v876
      %v1008 = vpop.permute.xlu0 %1007
      %vm1010 = vcmask 588800
      %v1012 = vsel %vm1010, %v875, 0
      %1014 = vmatprep.subr.mxu0 0.0
      %1015 = vmatpush1.msra.mxu0 %v893
      %1016 = vmatprep.subr.mxu0 0.0
      %1017 = vmatpush1.msra.mxu0 %v909
      %1018 = vmatprep.subr.mxu0 0.0
      %1019 = vmatpush1.msra.mxu0 %v925
      %1020 = vmatprep.subr.mxu0 0.0
      %1021 = vmatpush1.msra.mxu0 %v940
      %1022 = vmatprep.subr.mxu0 0.0
      %1023 = vmatpush1.msra.mxu0 %v874
      %1024 = vmatprep.subr.mxu0 0.0
      %1025 = vmatpush1.msra.mxu0 %v956
      %1026 = vmatprep.subr.mxu0 0.0
      %1027 = vmatpush1.msra.mxu0 %v972
      %1028 = vmatprep.subr.mxu0 0.0
      %1029 = vmatpush1.msra.mxu0 %v988
      %1030 = vmatprep.subr.mxu0 0.0
      %1031 = vmatpush1.msra.mxu0 %v1004
      %1032 = vmatprep.subr.mxu0 0.0
      %1033 = vmatpush1.msra.mxu0 0.0
      %1034 = vmatprep.subr.mxu0 0.0
      %1035 = vmatpush1.msra.mxu0 0.0
      %1036 = vmatprep.subr.mxu0 0.0
      %1037 = vmatpush1.msra.mxu0 0.0
      %1038 = vmatprep.subr.mxu0 0.0
      %1039 = vmatpush1.msra.mxu0 0.0
      %1040 = vmatprep.subr.mxu0 0.0
      %1041 = vmatpush1.msra.mxu0 0.0
      %1042 = vmatprep.subr.mxu0 0.0
      %1043 = vmatpush1.msra.mxu0 0.0
      %1044 = vmatprep.subr.mxu0 0.0
      %1045 = vmatpush1.msra.mxu0 0.0
      %1046 = vmatprep.subr.mxu0 0.0
      %1047 = vmatpush1.msra.mxu0 0.0
      %1048 = vmatprep.subr.mxu0 0.0
      %1049 = vmatpush1.msra.mxu0 0.0
      %1050 = vmatprep.subr.mxu0 0.0
      %1051 = vmatpush1.msra.mxu0 0.0
      %1052 = vmatprep.subr.mxu0 0.0
      %1053 = vmatpush1.msra.mxu0 0.0
      %1054 = vmatprep.subr.mxu0 0.0
      %1055 = vmatpush1.msra.mxu0 0.0
      %1056 = vmatprep.subr.mxu0 0.0
      %1057 = vmatpush1.msra.mxu0 0.0
      %1058 = vmatprep.subr.mxu0 0.0
      %1059 = vmatpush1.msra.mxu0 0.0
      %1060 = vmatprep.subr.mxu0 0.0
      %1061 = vmatpush1.msra.mxu0 0.0
      %1062 = vmatprep.subr.mxu0 0.0
      %1063 = vmatpush1.msra.mxu0 0.0
      %1064 = vmatprep.subr.mxu0 0.0
      %1065 = vmatpush1.msra.mxu0 0.0
      %1066 = vmatprep.subr.mxu0 0.0
      %1067 = vmatpush1.msra.mxu0 0.0
      %1068 = vmatprep.subr.mxu0 0.0
      %1069 = vmatpush1.msra.mxu0 0.0
      %1070 = vmatprep.subr.mxu0 0.0
      %1071 = vmatpush1.msra.mxu0 0.0
      %1072 = vmatprep.subr.mxu0 0.0
      %1073 = vmatpush1.msra.mxu0 0.0
      %1074 = vmatprep.subr.mxu0 0.0
      %1075 = vmatpush1.msra.mxu0 0.0
      %1076 = vmatprep.subr.mxu0 0.0
      %1077 = vmatpush1.msra.mxu0 0.0
      %1078 = vmatprep.mubr.f32.mxu0 0.0
      %1079 = vmatmul.mubr.f32.gmra.mrb[0].mxu0 %v1012
      %v1080 = vpop.f32.mrb[0].mxu0
      %v1081 = vadd.f32 %v1008, %v1080
      %v1082 = vpop.f32.mrb[0].mxu0
      %1083 = vdwg.mxu0
      %v1084 = vmax.f32 %v1081, 0.0
      %s1085 = scalar_lea.vmem %s5, 8
      %v1086 = vld [vmem:[%s1085] sm:$0xff]
      %s1087 = scalar_lea.vmem %s6, 8
      %v1088 = vld [vmem:[%s1087] sm:$0xff]
      %1090 = vrot.lane.b32.xlu0 %v1084, 73
      %v1091 = vpop.permute.xlu0 %1090
      %1093 = vrot.lane.b32.xlu0 %v1084, 9
      %v1094 = vpop.permute.xlu0 %1093
      %v1096 = vsel %vm884, %v1091, %v1094
      %v1097 = vsel %vm892, %v1096, 0.0
      %1098 = vrot.lane.b32.xlu0 %v1084, 72
      %v1099 = vpop.permute.xlu0 %1098
      %1101 = vrot.lane.b32.xlu0 %v1084, 8
      %v1102 = vpop.permute.xlu0 %1101
      %v1104 = vsel %vm900, %v1099, %v1102
      %v1105 = vsel %vm908, %v1104, 0.0
      %1106 = vrot.lane.b32.xlu0 %v1084, 71
      %v1107 = vpop.permute.xlu0 %1106
      %1109 = vrot.lane.b32.xlu0 %v1084, 7
      %v1110 = vpop.permute.xlu0 %1109
      %v1112 = vsel %vm916, %v1107, %v1110
      %v1113 = vsel %vm924, %v1112, 0.0
      %1114 = vrot.lane.b32.xlu0 %v1084, 65
      %v1115 = vpop.permute.xlu0 %1114
      %1117 = vrot.lane.b32.xlu0 %v1084, 1
      %v1118 = vpop.permute.xlu0 %1117
      %v1120 = vsel %vm437, %v1115, %v1118
      %v1121 = vsel %vm939, %v1120, 0.0
      %1122 = vrot.lane.b32.xlu0 %v1084, 127
      %v1123 = vpop.permute.xlu0 %1122
      %1125 = vrot.lane.b32.xlu0 %v1084, 63
      %v1126 = vpop.permute.xlu0 %1125
      %v1128 = vsel %vm947, %v1123, %v1126
      %v1129 = vsel %vm955, %v1128, 0.0
      %1130 = vrot.lane.b32.xlu0 %v1084, 121
      %v1131 = vpop.permute.xlu0 %1130
      %1133 = vrot.lane.b32.xlu0 %v1084, 57
      %v1134 = vpop.permute.xlu0 %1133
      %v1136 = vsel %vm963, %v1131, %v1134
      %v1137 = vsel %vm971, %v1136, 0.0
      %1138 = vrot.lane.b32.xlu0 %v1084, 120
      %v1139 = vpop.permute.xlu0 %1138
      %1141 = vrot.lane.b32.xlu0 %v1084, 56
      %v1142 = vpop.permute.xlu0 %1141
      %v1144 = vsel %vm979, %v1139, %v1142
      %v1145 = vsel %vm987, %v1144, 0.0
      %1146 = vrot.lane.b32.xlu0 %v1084, 119
      %v1147 = vpop.permute.xlu0 %1146
      %1149 = vrot.lane.b32.xlu0 %v1084, 55
      %v1150 = vpop.permute.xlu0 %1149
      %v1152 = vsel %vm995, %v1147, %v1150
      %v1153 = vsel %vm1003, %v1152, 0.0
      %1155 = vset.pattern.permute.xlu0 0
      %1156 = vperm.xlu0 %1155, %v1088
      %v1157 = vpop.permute.xlu0 %1156
      %v1160 = vsel %vm1010, %v1086, 0
      %1162 = vmatprep.subr.mxu0 0.0
      %1163 = vmatpush1.msra.mxu0 %v1097
      %1164 = vmatprep.subr.mxu0 0.0
      %1165 = vmatpush1.msra.mxu0 %v1105
      %1166 = vmatprep.subr.mxu0 0.0
      %1167 = vmatpush1.msra.mxu0 %v1113
      %1168 = vmatprep.subr.mxu0 0.0
      %1169 = vmatpush1.msra.mxu0 %v1121
      %1170 = vmatprep.subr.mxu0 0.0
      %1171 = vmatpush1.msra.mxu0 %v1084
      %1172 = vmatprep.subr.mxu0 0.0
      %1173 = vmatpush1.msra.mxu0 %v1129
      %1174 = vmatprep.subr.mxu0 0.0
      %1175 = vmatpush1.msra.mxu0 %v1137
      %1176 = vmatprep.subr.mxu0 0.0
      %1177 = vmatpush1.msra.mxu0 %v1145
      %1178 = vmatprep.subr.mxu0 0.0
      %1179 = vmatpush1.msra.mxu0 %v1153
      %1180 = vmatprep.subr.mxu0 0.0
      %1181 = vmatpush1.msra.mxu0 0.0
      %1182 = vmatprep.subr.mxu0 0.0
      %1183 = vmatpush1.msra.mxu0 0.0
      %1184 = vmatprep.subr.mxu0 0.0
      %1185 = vmatpush1.msra.mxu0 0.0
      %1186 = vmatprep.subr.mxu0 0.0
      %1187 = vmatpush1.msra.mxu0 0.0
      %1188 = vmatprep.subr.mxu0 0.0
      %1189 = vmatpush1.msra.mxu0 0.0
      %1190 = vmatprep.subr.mxu0 0.0
      %1191 = vmatpush1.msra.mxu0 0.0
      %1192 = vmatprep.subr.mxu0 0.0
      %1193 = vmatpush1.msra.mxu0 0.0
      %1194 = vmatprep.subr.mxu0 0.0
      %1195 = vmatpush1.msra.mxu0 0.0
      %1196 = vmatprep.subr.mxu0 0.0
      %1197 = vmatpush1.msra.mxu0 0.0
      %1198 = vmatprep.subr.mxu0 0.0
      %1199 = vmatpush1.msra.mxu0 0.0
      %1200 = vmatprep.subr.mxu0 0.0
      %1201 = vmatpush1.msra.mxu0 0.0
      %1202 = vmatprep.subr.mxu0 0.0
      %1203 = vmatpush1.msra.mxu0 0.0
      %1204 = vmatprep.subr.mxu0 0.0
      %1205 = vmatpush1.msra.mxu0 0.0
      %1206 = vmatprep.subr.mxu0 0.0
      %1207 = vmatpush1.msra.mxu0 0.0
      %1208 = vmatprep.subr.mxu0 0.0
      %1209 = vmatpush1.msra.mxu0 0.0
      %1210 = vmatprep.subr.mxu0 0.0
      %1211 = vmatpush1.msra.mxu0 0.0
      %1212 = vmatprep.subr.mxu0 0.0
      %1213 = vmatpush1.msra.mxu0 0.0
      %1214 = vmatprep.subr.mxu0 0.0
      %1215 = vmatpush1.msra.mxu0 0.0
      %1216 = vmatprep.subr.mxu0 0.0
      %1217 = vmatpush1.msra.mxu0 0.0
      %1218 = vmatprep.subr.mxu0 0.0
      %1219 = vmatpush1.msra.mxu0 0.0
      %1220 = vmatprep.subr.mxu0 0.0
      %1221 = vmatpush1.msra.mxu0 0.0
      %1222 = vmatprep.subr.mxu0 0.0
      %1223 = vmatpush1.msra.mxu0 0.0
      %1224 = vmatprep.subr.mxu0 0.0
      %1225 = vmatpush1.msra.mxu0 0.0
      %1226 = vmatprep.mubr.f32.mxu0 0.0
      %1227 = vmatmul.mubr.f32.gmra.mrb[0].mxu0 %v1160
      %v1228 = vpop.f32.mrb[0].mxu0
      %v1229 = vadd.f32 %v1157, %v1228
      %v1230 = vpop.f32.mrb[0].mxu0
      %1231 = vdwg.mxu0
      %v1232 = vadd.f32 %v871, %v1229
      %v1233 = vmax.f32 %v1232, 0.0
      %s1234 = scalar_lea.vmem %s5, 16
      %v1235 = vld [vmem:[%s1234] sm:$0xff]
      %s1236 = scalar_lea.vmem %s6, 16
      %v1237 = vld [vmem:[%s1236] sm:$0xff]
      %1239 = vrot.lane.b32.xlu0 %v1233, 73
      %v1240 = vpop.permute.xlu0 %1239
      %1242 = vrot.lane.b32.xlu0 %v1233, 9
      %v1243 = vpop.permute.xlu0 %1242
      %v1245 = vsel %vm884, %v1240, %v1243
      %v1246 = vsel %vm892, %v1245, 0.0
      %1247 = vrot.lane.b32.xlu0 %v1233, 72
      %v1248 = vpop.permute.xlu0 %1247
      %1250 = vrot.lane.b32.xlu0 %v1233, 8
      %v1251 = vpop.permute.xlu0 %1250
      %v1253 = vsel %vm900, %v1248, %v1251
      %v1254 = vsel %vm908, %v1253, 0.0
      %1255 = vrot.lane.b32.xlu0 %v1233, 71
      %v1256 = vpop.permute.xlu0 %1255
      %1258 = vrot.lane.b32.xlu0 %v1233, 7
      %v1259 = vpop.permute.xlu0 %1258
      %v1261 = vsel %vm916, %v1256, %v1259
      %v1262 = vsel %vm924, %v1261, 0.0
      %1263 = vrot.lane.b32.xlu0 %v1233, 65
      %v1264 = vpop.permute.xlu0 %1263
      %1266 = vrot.lane.b32.xlu0 %v1233, 1
      %v1267 = vpop.permute.xlu0 %1266
      %v1269 = vsel %vm437, %v1264, %v1267
      %v1270 = vsel %vm939, %v1269, 0.0
      %1271 = vrot.lane.b32.xlu0 %v1233, 127
      %v1272 = vpop.permute.xlu0 %1271
      %1274 = vrot.lane.b32.xlu0 %v1233, 63
      %v1275 = vpop.permute.xlu0 %1274
      %v1277 = vsel %vm947, %v1272, %v1275
      %v1278 = vsel %vm955, %v1277, 0.0
      %1279 = vrot.lane.b32.xlu0 %v1233, 121
      %v1280 = vpop.permute.xlu0 %1279
      %1282 = vrot.lane.b32.xlu0 %v1233, 57
      %v1283 = vpop.permute.xlu0 %1282
      %v1285 = vsel %vm963, %v1280, %v1283
      %v1286 = vsel %vm971, %v1285, 0.0
      %1287 = vrot.lane.b32.xlu0 %v1233, 120
      %v1288 = vpop.permute.xlu0 %1287
      %1290 = vrot.lane.b32.xlu0 %v1233, 56
      %v1291 = vpop.permute.xlu0 %1290
      %v1293 = vsel %vm979, %v1288, %v1291
      %v1294 = vsel %vm987, %v1293, 0.0
      %1295 = vrot.lane.b32.xlu0 %v1233, 119
      %v1296 = vpop.permute.xlu0 %1295
      %1298 = vrot.lane.b32.xlu0 %v1233, 55
      %v1299 = vpop.permute.xlu0 %1298
      %v1301 = vsel %vm995, %v1296, %v1299
      %v1302 = vsel %vm1003, %v1301, 0.0
      %1304 = vset.pattern.permute.xlu0 0
      %1305 = vperm.xlu0 %1304, %v1237
      %v1306 = vpop.permute.xlu0 %1305
      %v1309 = vsel %vm1010, %v1235, 0
      %1311 = vmatprep.subr.mxu0 0.0
      %1312 = vmatpush1.msra.mxu0 %v1246
      %1313 = vmatprep.subr.mxu0 0.0
      %1314 = vmatpush1.msra.mxu0 %v1254
      %1315 = vmatprep.subr.mxu0 0.0
      %1316 = vmatpush1.msra.mxu0 %v1262
      %1317 = vmatprep.subr.mxu0 0.0
      %1318 = vmatpush1.msra.mxu0 %v1270
      %1319 = vmatprep.subr.mxu0 0.0
      %1320 = vmatpush1.msra.mxu0 %v1233
      %1321 = vmatprep.subr.mxu0 0.0
      %1322 = vmatpush1.msra.mxu0 %v1278
      %1323 = vmatprep.subr.mxu0 0.0
      %1324 = vmatpush1.msra.mxu0 %v1286
      %1325 = vmatprep.subr.mxu0 0.0
      %1326 = vmatpush1.msra.mxu0 %v1294
      %1327 = vmatprep.subr.mxu0 0.0
      %1328 = vmatpush1.msra.mxu0 %v1302
      %1329 = vmatprep.subr.mxu0 0.0
      %1330 = vmatpush1.msra.mxu0 0.0
      %1331 = vmatprep.subr.mxu0 0.0
      %1332 = vmatpush1.msra.mxu0 0.0
      %1333 = vmatprep.subr.mxu0 0.0
      %1334 = vmatpush1.msra.mxu0 0.0
      %1335 = vmatprep.subr.mxu0 0.0
      %1336 = vmatpush1.msra.mxu0 0.0
      %1337 = vmatprep.subr.mxu0 0.0
      %1338 = vmatpush1.msra.mxu0 0.0
      %1339 = vmatprep.subr.mxu0 0.0
      %1340 = vmatpush1.msra.mxu0 0.0
      %1341 = vmatprep.subr.mxu0 0.0
      %1342 = vmatpush1.msra.mxu0 0.0
      %1343 = vmatprep.subr.mxu0 0.0
      %1344 = vmatpush1.msra.mxu0 0.0
      %1345 = vmatprep.subr.mxu0 0.0
      %1346 = vmatpush1.msra.mxu0 0.0
      %1347 = vmatprep.subr.mxu0 0.0
      %1348 = vmatpush1.msra.mxu0 0.0
      %1349 = vmatprep.subr.mxu0 0.0
      %1350 = vmatpush1.msra.mxu0 0.0
      %1351 = vmatprep.subr.mxu0 0.0
      %1352 = vmatpush1.msra.mxu0 0.0
      %1353 = vmatprep.subr.mxu0 0.0
      %1354 = vmatpush1.msra.mxu0 0.0
      %1355 = vmatprep.subr.mxu0 0.0
      %1356 = vmatpush1.msra.mxu0 0.0
      %1357 = vmatprep.subr.mxu0 0.0
      %1358 = vmatpush1.msra.mxu0 0.0
      %1359 = vmatprep.subr.mxu0 0.0
      %1360 = vmatpush1.msra.mxu0 0.0
      %1361 = vmatprep.subr.mxu0 0.0
      %1362 = vmatpush1.msra.mxu0 0.0
      %1363 = vmatprep.subr.mxu0 0.0
      %1364 = vmatpush1.msra.mxu0 0.0
      %1365 = vmatprep.subr.mxu0 0.0
      %1366 = vmatpush1.msra.mxu0 0.0
      %1367 = vmatprep.subr.mxu0 0.0
      %1368 = vmatpush1.msra.mxu0 0.0
      %1369 = vmatprep.subr.mxu0 0.0
      %1370 = vmatpush1.msra.mxu0 0.0
      %1371 = vmatprep.subr.mxu0 0.0
      %1372 = vmatpush1.msra.mxu0 0.0
      %1373 = vmatprep.subr.mxu0 0.0
      %1374 = vmatpush1.msra.mxu0 0.0
      %1375 = vmatprep.mubr.f32.mxu0 0.0
      %1376 = vmatmul.mubr.f32.gmra.mrb[0].mxu0 %v1309
      %v1377 = vpop.f32.mrb[0].mxu0
      %v1378 = vadd.f32 %v1306, %v1377
      %v1379 = vpop.f32.mrb[0].mxu0
      %1380 = vdwg.mxu0
      %v1381 = vmax.f32 %v1378, 0.0
      %s1382 = scalar_lea.vmem %s5, 24
      %v1383 = vld [vmem:[%s1382] sm:$0xff]
      %s1384 = scalar_lea.vmem %s6, 24
      %v1385 = vld [vmem:[%s1384] sm:$0xff]
      %1387 = vrot.lane.b32.xlu0 %v1381, 73
      %v1388 = vpop.permute.xlu0 %1387
      %1390 = vrot.lane.b32.xlu0 %v1381, 9
      %v1391 = vpop.permute.xlu0 %1390
      %v1393 = vsel %vm884, %v1388, %v1391
      %v1394 = vsel %vm892, %v1393, 0.0
      %1395 = vrot.lane.b32.xlu0 %v1381, 72
      %v1396 = vpop.permute.xlu0 %1395
      %1398 = vrot.lane.b32.xlu0 %v1381, 8
      %v1399 = vpop.permute.xlu0 %1398
      %v1401 = vsel %vm900, %v1396, %v1399
      %v1402 = vsel %vm908, %v1401, 0.0
      %1403 = vrot.lane.b32.xlu0 %v1381, 71
      %v1404 = vpop.permute.xlu0 %1403
      %1406 = vrot.lane.b32.xlu0 %v1381, 7
      %v1407 = vpop.permute.xlu0 %1406
      %v1409 = vsel %vm916, %v1404, %v1407
      %v1410 = vsel %vm924, %v1409, 0.0
      %1411 = vrot.lane.b32.xlu0 %v1381, 65
      %v1412 = vpop.permute.xlu0 %1411
      %1414 = vrot.lane.b32.xlu0 %v1381, 1
      %v1415 = vpop.permute.xlu0 %1414
      %v1417 = vsel %vm437, %v1412, %v1415
      %v1418 = vsel %vm939, %v1417, 0.0
      %1419 = vrot.lane.b32.xlu0 %v1381, 127
      %v1420 = vpop.permute.xlu0 %1419
      %1422 = vrot.lane.b32.xlu0 %v1381, 63
      %v1423 = vpop.permute.xlu0 %1422
      %v1425 = vsel %vm947, %v1420, %v1423
      %v1426 = vsel %vm955, %v1425, 0.0
      %1427 = vrot.lane.b32.xlu0 %v1381, 121
      %v1428 = vpop.permute.xlu0 %1427
      %1430 = vrot.lane.b32.xlu0 %v1381, 57
      %v1431 = vpop.permute.xlu0 %1430
      %v1433 = vsel %vm963, %v1428, %v1431
      %v1434 = vsel %vm971, %v1433, 0.0
      %1435 = vrot.lane.b32.xlu0 %v1381, 120
      %v1436 = vpop.permute.xlu0 %1435
      %1438 = vrot.lane.b32.xlu0 %v1381, 56
      %v1439 = vpop.permute.xlu0 %1438
      %v1441 = vsel %vm979, %v1436, %v1439
      %v1442 = vsel %vm987, %v1441, 0.0
      %1443 = vrot.lane.b32.xlu0 %v1381, 119
      %v1444 = vpop.permute.xlu0 %1443
      %1446 = vrot.lane.b32.xlu0 %v1381, 55
      %v1447 = vpop.permute.xlu0 %1446
      %v1449 = vsel %vm995, %v1444, %v1447
      %v1450 = vsel %vm1003, %v1449, 0.0
      %1452 = vset.pattern.permute.xlu0 0
      %1453 = vperm.xlu0 %1452, %v1385
      %v1454 = vpop.permute.xlu0 %1453
      %v1457 = vsel %vm1010, %v1383, 0
      %1459 = vmatprep.subr.mxu0 0.0
      %1460 = vmatpush1.msra.mxu0 %v1394
      %1461 = vmatprep.subr.mxu0 0.0
      %1462 = vmatpush1.msra.mxu0 %v1402
      %1463 = vmatprep.subr.mxu0 0.0
      %1464 = vmatpush1.msra.mxu0 %v1410
      %1465 = vmatprep.subr.mxu0 0.0
      %1466 = vmatpush1.msra.mxu0 %v1418
      %1467 = vmatprep.subr.mxu0 0.0
      %1468 = vmatpush1.msra.mxu0 %v1381
      %1469 = vmatprep.subr.mxu0 0.0
      %1470 = vmatpush1.msra.mxu0 %v1426
      %1471 = vmatprep.subr.mxu0 0.0
      %1472 = vmatpush1.msra.mxu0 %v1434
      %1473 = vmatprep.subr.mxu0 0.0
      %1474 = vmatpush1.msra.mxu0 %v1442
      %1475 = vmatprep.subr.mxu0 0.0
      %1476 = vmatpush1.msra.mxu0 %v1450
      %1477 = vmatprep.subr.mxu0 0.0
      %1478 = vmatpush1.msra.mxu0 0.0
      %1479 = vmatprep.subr.mxu0 0.0
      %1480 = vmatpush1.msra.mxu0 0.0
      %1481 = vmatprep.subr.mxu0 0.0
      %1482 = vmatpush1.msra.mxu0 0.0
      %1483 = vmatprep.subr.mxu0 0.0
      %1484 = vmatpush1.msra.mxu0 0.0
      %1485 = vmatprep.subr.mxu0 0.0
      %1486 = vmatpush1.msra.mxu0 0.0
      %1487 = vmatprep.subr.mxu0 0.0
      %1488 = vmatpush1.msra.mxu0 0.0
      %1489 = vmatprep.subr.mxu0 0.0
      %1490 = vmatpush1.msra.mxu0 0.0
      %1491 = vmatprep.subr.mxu0 0.0
      %1492 = vmatpush1.msra.mxu0 0.0
      %1493 = vmatprep.subr.mxu0 0.0
      %1494 = vmatpush1.msra.mxu0 0.0
      %1495 = vmatprep.subr.mxu0 0.0
      %1496 = vmatpush1.msra.mxu0 0.0
      %1497 = vmatprep.subr.mxu0 0.0
      %1498 = vmatpush1.msra.mxu0 0.0
      %1499 = vmatprep.subr.mxu0 0.0
      %1500 = vmatpush1.msra.mxu0 0.0
      %1501 = vmatprep.subr.mxu0 0.0
      %1502 = vmatpush1.msra.mxu0 0.0
      %1503 = vmatprep.subr.mxu0 0.0
      %1504 = vmatpush1.msra.mxu0 0.0
      %1505 = vmatprep.subr.mxu0 0.0
      %1506 = vmatpush1.msra.mxu0 0.0
      %1507 = vmatprep.subr.mxu0 0.0
      %1508 = vmatpush1.msra.mxu0 0.0
      %1509 = vmatprep.subr.mxu0 0.0
      %1510 = vmatpush1.msra.mxu0 0.0
      %1511 = vmatprep.subr.mxu0 0.0
      %1512 = vmatpush1.msra.mxu0 0.0
      %1513 = vmatprep.subr.mxu0 0.0
      %1514 = vmatpush1.msra.mxu0 0.0
      %1515 = vmatprep.subr.mxu0 0.0
      %1516 = vmatpush1.msra.mxu0 0.0
      %1517 = vmatprep.subr.mxu0 0.0
      %1518 = vmatpush1.msra.mxu0 0.0
      %1519 = vmatprep.subr.mxu0 0.0
      %1520 = vmatpush1.msra.mxu0 0.0
      %1521 = vmatprep.subr.mxu0 0.0
      %1522 = vmatpush1.msra.mxu0 0.0
      %1523 = vmatprep.mubr.f32.mxu0 0.0
      %1524 = vmatmul.mubr.f32.gmra.mrb[0].mxu0 %v1457
      %v1525 = vpop.f32.mrb[0].mxu0
      %v1526 = vadd.f32 %v1454, %v1525
      %v1527 = vpop.f32.mrb[0].mxu0
      %1528 = vdwg.mxu0
      %v1529 = vadd.f32 %v1232, %v1526
      %vm1530 = vcmask 523264
      %1531 = vst.msk [vmem:[%s305] sm:$0xff] %vm1530, %v1529
      %p1532 = scmp.lt.s32.totalorder %s19, 1
      %s1533 = scalar_select %p1532, %s19, 1
      %s1534 = smul.addr %s1533, 8
      %s1535 = scalar_lea.vmem %s8, %s1534
      // Predicated region
      $region53: #{conv_sequence_forward.1} parent=51 // pred_check
        %p1536 = pneg %p210
      $region54: #{conv_sequence_forward.1} parent=51 // pred_check_branch
        %1538 = sbr.rel (%p1536) target = $region56
      $region55: #{conv_sequence_forward.1} parent=51 // pred_region
        _
      $region56: #{conv_sequence_forward.1} parent=51 // pred_fallthru
        _
    $region52: #{conv_sequence_forward.1} parent=5 // pred_fallthru
      _
    %p1539 = scmp.le.s32.totalorder 2, %s14
    // Predicated region
    $region57: #{conv_sequence_forward.1} parent=5 // pred_check
      %p1540 = pneg %p1539
    $region58: #{conv_sequence_forward.1} parent=5 // pred_check_branch
      %1542 = sbr.rel (%p1540) target = $region60
    $region59: #{conv_sequence_forward.1} parent=5 // pred_region
      %s1543 = ssub.s32 %s14, 2
      // Predicated region
      $region61: #{conv_sequence_forward.1} parent=59 // pred_check
        %p1544 = pneg %p216
      $region62: #{conv_sequence_forward.1} parent=59 // pred_check_branch
        %1546 = sbr.rel (%p1544) target = $region64
      $region63: #{conv_sequence_forward.1} parent=59 // pred_region
        %p1547 = scmp.lt.s32.totalorder %s20, 1
        %s1548 = scalar_select %p1547, %s20, 1
        %s1549 = smul.addr %s1548, 8
        %s1550 = scalar_lea.vmem %s8, %s1549
      $region64: #{conv_sequence_forward.1} parent=59 // pred_fallthru
        _
    $region60: #{conv_sequence_forward.1} parent=5 // pred_fallthru
      _
  $region6: #{conv_sequence_forward.1} parent=0 // loop_footer
    %s18 = sadd.s32 1, %s14
  $region7: #{conv_sequence_forward.1} parent=0 // loop_footer_branch
    %13 = sbr.rel target = $region3
  $region8: #{conv_sequence_forward.1} parent=0 // loop_exit
    _

</llo_original>
